<compile_context>
chip_gen: v5e
topology: v5e:2x2
jax: 0.10.0
libtpu: 0.0.40
codegen_flags: <defaults>
</compile_context>

<pallas_src>
import jax
import jax.numpy as jnp
from jax.experimental import pallas as pl
from jax.experimental.pallas import tpu as pltpu


def _fused_kernel(x23_ref, x17_ref, w1s_ref, shift_ref, w2_ref, o_ref):
    # conv2d8 (1x1 conv == matmul over channels), BN scale pre-folded into w1 rows
    y = jnp.dot(w1s_ref[...], x23_ref[...], preferred_element_type=jnp.float32)
    # BN shift + residual add + ReLU (all column-wise independent)
    z = jnp.maximum(x17_ref[...] + y + shift_ref[...], 0.0)
    # conv2d9 (1x1 conv == matmul over channels)
    o_ref[...] = jnp.dot(w2_ref[...], z,
                         preferred_element_type=jnp.float32).astype(o_ref.dtype)


@jax.jit
def fused_forward(x23, x17, w1, gamma, beta, run_mean, run_var, w2):
    """x23, x17: NCHW float32. w1, w2: (Cout, Cin, 1, 1). Returns NCHW float32."""
    eps = 1e-5
    N, C, H, W = x23.shape
    HW = H * W

    # channel-major: (N, C, H, W) -> (N, C, H*W).  Pure reshape, no data movement.
    x23_cm = x23.reshape(N, C, HW)
    x17_cm = x17.reshape(N, C, HW)

    # fold BatchNorm (running-stats) into the first conv weight + a shift vector
    scale = gamma / jnp.sqrt(run_var + eps)                      # (C,)
    shift = (beta - run_mean * scale).reshape(C, 1).astype(jnp.float32)
    w1_s = (w1.reshape(C, C) * scale[:, None]).astype(jnp.float32)   # scale output rows
    w2_m = w2.reshape(C, C).astype(jnp.float32)

    # column tiling: ~2 lane-aligned (multiple-of-128) blocks so both v7x
    # TensorCores get work; v5e/v6e just see one extra cheap grid step.
    col_block = 128 * max(1, pl.cdiv(pl.cdiv(HW, 128), 2))
    grid = (N, pl.cdiv(HW, col_block))

    out_cm = pl.pallas_call(
        _fused_kernel,
        out_shape=jax.ShapeDtypeStruct((N, C, HW), jnp.float32),
        grid_spec=pltpu.PrefetchScalarGridSpec(
            num_scalar_prefetch=0,
            grid=grid,
            in_specs=[
                pl.BlockSpec((None, C, col_block), lambda n, j: (n, 0, j)),  # x23 tile
                pl.BlockSpec((None, C, col_block), lambda n, j: (n, 0, j)),  # x17 tile
                pl.BlockSpec((C, C), lambda n, j: (0, 0)),                   # w1 * bn_scale
                pl.BlockSpec((C, 1), lambda n, j: (0, 0)),                   # bn shift
                pl.BlockSpec((C, C), lambda n, j: (0, 0)),                   # w2
            ],
            out_specs=pl.BlockSpec((None, C, col_block), lambda n, j: (n, 0, j)),
        ),
        compiler_params=pltpu.CompilerParams(
            dimension_semantics=("parallel", "parallel")),
    )(x23_cm, x17_cm, w1_s, shift, w2_m)

    # (N, C, H*W) -> NCHW (pure reshape, no transpose)
    return out_cm.reshape(N, C, H, W)


def _reference(x23, x17, w1, gamma, beta, run_mean, run_var, w2):
    eps = 1e-5
    C = x23.shape[1]
    y = jnp.einsum("oc,nchw->nohw", w1.reshape(C, C), x23)
    y = (y - run_mean[None, :, None, None]) / jnp.sqrt(run_var + eps)[None, :, None, None]
    y = y * gamma[None, :, None, None] + beta[None, :, None, None]
    z = jnp.maximum(x17 + y, 0.0)
    return jnp.einsum("oc,nchw->nohw", w2.reshape(C, C), z)


if __name__ == "__main__":
    key = jax.random.PRNGKey(0)
    k1, k2, k3, k4, k5, k6, k7, k8 = jax.random.split(key, 8)

    # shapes implied by the module: N=1, C=128, H=W=28
    N, C, H, W = 1, 128, 28, 28

    x23 = jax.random.normal(k1, (N, C, H, W), dtype=jnp.float32)
    x17 = jax.random.normal(k2, (N, C, H, W), dtype=jnp.float32)

    # deterministic parameter init
    w1 = jax.random.normal(k3, (C, C, 1, 1), dtype=jnp.float32) * 0.05
    w2 = jax.random.normal(k4, (C, C, 1, 1), dtype=jnp.float32) * 0.05
    gamma = 1.0 + 0.1 * jax.random.normal(k5, (C,), dtype=jnp.float32)
    beta = 0.1 * jax.random.normal(k6, (C,), dtype=jnp.float32)
    run_mean = 0.1 * jax.random.normal(k7, (C,), dtype=jnp.float32)
    run_var = jnp.abs(jax.random.normal(k8, (C,), dtype=jnp.float32)) + 0.5

    out = fused_forward(x23, x17, w1, gamma, beta, run_mean, run_var, w2)
    out = jax.block_until_ready(out)

    ref = _reference(x23, x17, w1, gamma, beta, run_mean, run_var, w2)
    assert out.shape == (N, C, H, W), out.shape
    err = float(jnp.max(jnp.abs(out - ref)))
    assert jnp.allclose(out, ref, atol=1e-3, rtol=1e-3), err

    print("KERNEL_OK")
</pallas_src>

<mosaic_0001>
module attributes {stable_mosaic.version = 11 : i64} {
  func.func @_fused_kernel(%arg0: i32, %arg1: i32, %arg2: memref<1x128x512xf32, #tpu.memory_space<vmem>>, %arg3: memref<1x128x512xf32, #tpu.memory_space<vmem>>, %arg4: memref<128x128xf32, #tpu.memory_space<vmem>>, %arg5: memref<128x1xf32, #tpu.memory_space<vmem>>, %arg6: memref<128x128xf32, #tpu.memory_space<vmem>>, %arg7: memref<1x128x512xf32, #tpu.memory_space<vmem>>) attributes {dimension_semantics = [#tpu.dimension_semantics<parallel>, #tpu.dimension_semantics<parallel>], iteration_bounds = array<i64: 1, 2>, scalar_prefetch = 0 : i64, scratch_operands = 0 : i64, tpu.core_type = #tpu.core_type<tc>, window_params = [{transform_indices = @transform_0, window_bounds = array<i64: 1, 128, 512>}, {transform_indices = @transform_1, window_bounds = array<i64: 1, 128, 512>}, {pipeline_mode = #tpu.pipeline_mode<synchronous>, transform_indices = @transform_2, window_bounds = array<i64: 128, 128>}, {pipeline_mode = #tpu.pipeline_mode<synchronous>, transform_indices = @transform_3, window_bounds = array<i64: 128, 1>}, {pipeline_mode = #tpu.pipeline_mode<synchronous>, transform_indices = @transform_4, window_bounds = array<i64: 128, 128>}, {transform_indices = @transform_5, window_bounds = array<i64: 1, 128, 512>}]} {
    %c0 = arith.constant 0 : index
    %c0_0 = arith.constant 0 : index
    %0 = vector.load %arg4[%c0, %c0_0] : memref<128x128xf32, #tpu.memory_space<vmem>>, vector<128x128xf32>
    %c0_1 = arith.constant 0 : index
    %c0_2 = arith.constant 0 : index
    %c0_3 = arith.constant 0 : index
    %1 = vector.load %arg2[%c0_1, %c0_2, %c0_3] : memref<1x128x512xf32, #tpu.memory_space<vmem>>, vector<1x128x512xf32>
    %2 = vector.shape_cast %1 : vector<1x128x512xf32> to vector<128x512xf32>
    %cst = arith.constant dense<0.000000e+00> : vector<128x512xf32>
    %3 = tpu.matmul %0, %2, %cst {dimension_numbers = #tpu.dot_dimension_numbers<[1], [0], [0], [1], [0, 0, 1, 1], [], []>} : vector<128x128xf32>, vector<128x512xf32>, vector<128x512xf32> -> vector<128x512xf32>
    %c0_4 = arith.constant 0 : index
    %c0_5 = arith.constant 0 : index
    %c0_6 = arith.constant 0 : index
    %4 = vector.load %arg3[%c0_4, %c0_5, %c0_6] : memref<1x128x512xf32, #tpu.memory_space<vmem>>, vector<1x128x512xf32>
    %5 = vector.shape_cast %4 : vector<1x128x512xf32> to vector<128x512xf32>
    %6 = arith.addf %5, %3 : vector<128x512xf32>
    %c0_7 = arith.constant 0 : index
    %c0_8 = arith.constant 0 : index
    %7 = vector.load %arg5[%c0_7, %c0_8] : memref<128x1xf32, #tpu.memory_space<vmem>>, vector<128x1xf32>
    %8 = vector.broadcast %7 : vector<128x1xf32> to vector<128x512xf32>
    %9 = arith.addf %6, %8 : vector<128x512xf32>
    %cst_9 = arith.constant 0.000000e+00 : f32
    %10 = vector.broadcast %cst_9 : f32 to vector<128x512xf32>
    %11 = arith.maximumf %9, %10 : vector<128x512xf32>
    %c0_10 = arith.constant 0 : index
    %c0_11 = arith.constant 0 : index
    %12 = vector.load %arg6[%c0_10, %c0_11] : memref<128x128xf32, #tpu.memory_space<vmem>>, vector<128x128xf32>
    %cst_12 = arith.constant dense<0.000000e+00> : vector<128x512xf32>
    %13 = tpu.matmul %12, %11, %cst_12 {dimension_numbers = #tpu.dot_dimension_numbers<[1], [0], [0], [1], [0, 0, 1, 1], [], []>} : vector<128x128xf32>, vector<128x512xf32>, vector<128x512xf32> -> vector<128x512xf32>
    %c0_13 = arith.constant 0 : index
    %c0_14 = arith.constant 0 : index
    %c0_15 = arith.constant 0 : index
    %14 = vector.load %arg7[%c0_13, %c0_14, %c0_15] : memref<1x128x512xf32, #tpu.memory_space<vmem>>, vector<1x128x512xf32>
    %15 = vector.shape_cast %14 : vector<1x128x512xf32> to vector<128x512xf32>
    %16 = vector.shape_cast %13 : vector<128x512xf32> to vector<1x128x512xf32>
    tpu.vector_store %arg7[%c0_13, %c0_14, %c0_15], %16 {strides = array<i32>} : memref<1x128x512xf32, #tpu.memory_space<vmem>>, vector<1x128x512xf32>,
    return
  }
  func.func @transform_0(%arg0: i32, %arg1: i32) -> (i32, i32, i32) {
    %c0_i32 = arith.constant 0 : i32
    %c0_i32_0 = arith.constant 0 : i32
    return %arg0, %c0_i32, %arg1 : i32, i32, i32
  }
  func.func @transform_1(%arg0: i32, %arg1: i32) -> (i32, i32, i32) {
    %c0_i32 = arith.constant 0 : i32
    %c0_i32_0 = arith.constant 0 : i32
    return %arg0, %c0_i32, %arg1 : i32, i32, i32
  }
  func.func @transform_2(%arg0: i32, %arg1: i32) -> (i32, i32) {
    %c0_i32 = arith.constant 0 : i32
    %c0_i32_0 = arith.constant 0 : i32
    %c0_i32_1 = arith.constant 0 : i32
    return %c0_i32, %c0_i32_0 : i32, i32
  }
  func.func @transform_3(%arg0: i32, %arg1: i32) -> (i32, i32) {
    %c0_i32 = arith.constant 0 : i32
    %c0_i32_0 = arith.constant 0 : i32
    %c0_i32_1 = arith.constant 0 : i32
    return %c0_i32, %c0_i32_0 : i32, i32
  }
  func.func @transform_4(%arg0: i32, %arg1: i32) -> (i32, i32) {
    %c0_i32 = arith.constant 0 : i32
    %c0_i32_0 = arith.constant 0 : i32
    %c0_i32_1 = arith.constant 0 : i32
    return %c0_i32, %c0_i32_0 : i32, i32
  }
  func.func @transform_5(%arg0: i32, %arg1: i32) -> (i32, i32, i32) {
    %c0_i32 = arith.constant 0 : i32
    %c0_i32_0 = arith.constant 0 : i32
    return %arg0, %c0_i32, %arg1 : i32, i32, i32
  }
}

</mosaic_0001>

<llo_original>
// kernel: fused_forward.1
$region0: #{fused_forward.1}
  #allocation0 [shape = 'u32[]', space=smem, size = 0x4, offset = 0x4, fixed_abs, tag = 'smem constant byte address 0x4 - core index']
  #allocation1 [shape = 'u32[72,128]{1,0:T(1,128)}', space=vmem, size = 0x9000, scoped, tag = 'internal scratch']
  %s0 = inlined_call_operand.vmem [shape: f32[1,128,784], index: 0, kind: input, shape index: {}]
  %s1 = inlined_call_operand.vmem [shape: f32[1,128,784], index: 1, kind: input, shape index: {}]
  %s2 = inlined_call_operand.vmem [shape: f32[128,128], index: 2, kind: input, shape index: {}]
  %s3 = inlined_call_operand.vmem [shape: f32[128,1], index: 3, kind: input, shape index: {}]
  %s4 = inlined_call_operand.vmem [shape: f32[128,128], index: 4, kind: input, shape index: {}]
  %s5 = inlined_call_operand.vmem [shape: f32[1,128,784], index: 5, kind: output, shape index: {}]
  %s6 = sld [smem:[#allocation0]]
  $region247: #{fused_forward.1} parent=0
    _
  %s8 = ssub.s32 1, %s6
  %s9 = scalar_select 0, %s8, %s6
  $region1: #{fused_forward.1} parent=0
    #allocation2 [shape = 'u8[524288]{0}', space=vmem, size = 0x80000, scoped, tag = 'input window, operand 0']
    #allocation3 [shape = 'u8[524288]{0}', space=vmem, size = 0x80000, scoped, tag = 'input window, operand 1']
    #allocation4 [shape = 'u8[524288]{0}', space=vmem, size = 0x80000, scoped, tag = 'output window, operand 0']
    loop: start=0, step=1, limit=4
    $region2: #{fused_forward.1} parent=1 // loop_pre_header
      _
    $region3: #{fused_forward.1} parent=1 // loop_header
      %s11 = sphi 0, %s15
      %p12 = scmp.ge.s32.totalorder %s11, 4
      %s18 = sphi 0, %s30
      %s19 = sphi 0, %s26
      %s20 = sphi 0, %s18
      %s21 = sphi 0, %s19
      %s22 = sphi 0, %s20
      %s23 = sphi 0, %s21
      %s35 = sphi 0, %s37
      %s38 = sphi 0, %s35
      %s39 = sphi 0, %s38
      %s55 = sphi 0, %s39
      %s63 = sphi 0, %s65
      %s66 = sphi 0, %s63
      %s67 = sphi 0, %s66
      %s83 = sphi 0, %s67
      %s87 = sphi 0, %s87
      %s89 = sphi 0, %s87
      %s90 = sphi 0, %s89
      %s104 = sphi 0, %s90
      %s108 = sphi 0, %s108
      %s110 = sphi 0, %s108
      %s111 = sphi 0, %s110
      %s125 = sphi 0, %s111
      %s129 = sphi 0, %s129
      %s131 = sphi 0, %s129
      %s132 = sphi 0, %s131
      %s146 = sphi 0, %s132
      %s154 = sphi 0, %s156
      %s157 = sphi 0, %s154
      %s158 = sphi 0, %s157
      %s174 = sphi 0, %s158
    $region4: #{fused_forward.1} parent=1 // loop_header_branch
      %14 = sbr.rel (%p12) target = $region8
    $region5: #{fused_forward.1} parent=1 // loop_body
      %s16 = ssub.s32 %s11, 1
      %s17 = ssub.s32 %s11, 2
      %s24 = sadd.s32 1, %s19
      %p25 = scmp.ge.s32.totalorder %s24, 2
      %s26 = scalar_select %p25, 0, %s24
      %s27 = sadd.s32 1, %s18
      %s28 = scalar_select %p25, %s27, %s18
      %p29 = scmp.ge.s32.totalorder %s28, 1
      %s30 = scalar_select %p29, 0, %s28
      %s31 = ssub.s32 %s18, %s30
      %s32 = ssub.s32 %s19, %s26
      %s33 = sor.u32 %s31, %s32
      %p34 = scmp.eq.s32.totalorder %s33, 0
      %s36 = sadd.s32 %s35, 1
      %s37 = scalar_select %p34, %s35, %s36
      %p40 = pneg %p34
      %p41 = scmp.eq.s32.totalorder %s11, 1
      %p42 = por %p40, %p41
      %p43 = scmp.ne.s32.totalorder %s35, %s38
      %p44 = scmp.eq.s32.totalorder %s11, 0
      %p45 = por %p43, %p44
      %p46 = scmp.ne.s32.totalorder %s35, %s38
      %p47 = scmp.eq.s32.totalorder %s16, 1
      %p48 = por %p46, %p47
      %p49 = scmp.ne.s32.totalorder %s38, %s39
      %p50 = scmp.eq.s32.totalorder %s16, 0
      %p51 = por %p49, %p50
      %p52 = scmp.ne.s32.totalorder %s38, %s39
      %p53 = scmp.eq.s32.totalorder %s17, 1
      %p54 = por %p52, %p53
      %p56 = scmp.ne.s32.totalorder %s39, %s55
      %p57 = scmp.eq.s32.totalorder %s17, 0
      %p58 = por %p56, %p57
      %s59 = ssub.s32 %s18, %s30
      %s60 = ssub.s32 %s19, %s26
      %s61 = sor.u32 %s59, %s60
      %p62 = scmp.eq.s32.totalorder %s61, 0
      %s64 = sadd.s32 %s63, 1
      %s65 = scalar_select %p62, %s63, %s64
      %p68 = pneg %p62
      %p69 = scmp.eq.s32.totalorder %s11, 1
      %p70 = por %p68, %p69
      %p71 = scmp.ne.s32.totalorder %s63, %s66
      %p72 = scmp.eq.s32.totalorder %s11, 0
      %p73 = por %p71, %p72
      %p74 = scmp.ne.s32.totalorder %s63, %s66
      %p75 = scmp.eq.s32.totalorder %s16, 1
      %p76 = por %p74, %p75
      %p77 = scmp.ne.s32.totalorder %s66, %s67
      %p78 = scmp.eq.s32.totalorder %s16, 0
      %p79 = por %p77, %p78
      %p80 = scmp.ne.s32.totalorder %s66, %s67
      %p81 = scmp.eq.s32.totalorder %s17, 1
      %p82 = por %p80, %p81
      %p84 = scmp.ne.s32.totalorder %s67, %s83
      %p85 = scmp.eq.s32.totalorder %s17, 0
      %p86 = por %p84, %p85
      %s88 = sadd.s32 %s87, 1
      %p91 = scmp.eq.s32.totalorder %s11, 1
      %p92 = scmp.ne.s32.totalorder %s87, %s89
      %p93 = scmp.eq.s32.totalorder %s11, 0
      %p94 = por %p92, %p93
      %p95 = scmp.ne.s32.totalorder %s87, %s89
      %p96 = scmp.eq.s32.totalorder %s16, 1
      %p97 = por %p95, %p96
      %p98 = scmp.ne.s32.totalorder %s89, %s90
      %p99 = scmp.eq.s32.totalorder %s16, 0
      %p100 = por %p98, %p99
      %p101 = scmp.ne.s32.totalorder %s89, %s90
      %p102 = scmp.eq.s32.totalorder %s17, 1
      %p103 = por %p101, %p102
      %p105 = scmp.ne.s32.totalorder %s90, %s104
      %p106 = scmp.eq.s32.totalorder %s17, 0
      %p107 = por %p105, %p106
      %s109 = sadd.s32 %s108, 1
      %p112 = scmp.eq.s32.totalorder %s11, 1
      %p113 = scmp.ne.s32.totalorder %s108, %s110
      %p114 = scmp.eq.s32.totalorder %s11, 0
      %p115 = por %p113, %p114
      %p116 = scmp.ne.s32.totalorder %s108, %s110
      %p117 = scmp.eq.s32.totalorder %s16, 1
      %p118 = por %p116, %p117
      %p119 = scmp.ne.s32.totalorder %s110, %s111
      %p120 = scmp.eq.s32.totalorder %s16, 0
      %p121 = por %p119, %p120
      %p122 = scmp.ne.s32.totalorder %s110, %s111
      %p123 = scmp.eq.s32.totalorder %s17, 1
      %p124 = por %p122, %p123
      %p126 = scmp.ne.s32.totalorder %s111, %s125
      %p127 = scmp.eq.s32.totalorder %s17, 0
      %p128 = por %p126, %p127
      %s130 = sadd.s32 %s129, 1
      %p133 = scmp.eq.s32.totalorder %s11, 1
      %p134 = scmp.ne.s32.totalorder %s129, %s131
      %p135 = scmp.eq.s32.totalorder %s11, 0
      %p136 = por %p134, %p135
      %p137 = scmp.ne.s32.totalorder %s129, %s131
      %p138 = scmp.eq.s32.totalorder %s16, 1
      %p139 = por %p137, %p138
      %p140 = scmp.ne.s32.totalorder %s131, %s132
      %p141 = scmp.eq.s32.totalorder %s16, 0
      %p142 = por %p140, %p141
      %p143 = scmp.ne.s32.totalorder %s131, %s132
      %p144 = scmp.eq.s32.totalorder %s17, 1
      %p145 = por %p143, %p144
      %p147 = scmp.ne.s32.totalorder %s132, %s146
      %p148 = scmp.eq.s32.totalorder %s17, 0
      %p149 = por %p147, %p148
      %s150 = ssub.s32 %s18, %s30
      %s151 = ssub.s32 %s19, %s26
      %s152 = sor.u32 %s150, %s151
      %p153 = scmp.eq.s32.totalorder %s152, 0
      %s155 = sadd.s32 %s154, 1
      %s156 = scalar_select %p153, %s154, %s155
      %p159 = pneg %p153
      %p160 = scmp.eq.s32.totalorder %s11, 1
      %p161 = por %p159, %p160
      %p162 = scmp.ne.s32.totalorder %s154, %s157
      %p163 = scmp.eq.s32.totalorder %s11, 0
      %p164 = por %p162, %p163
      %p165 = scmp.ne.s32.totalorder %s154, %s157
      %p166 = scmp.eq.s32.totalorder %s16, 1
      %p167 = por %p165, %p166
      %p168 = scmp.ne.s32.totalorder %s157, %s158
      %p169 = scmp.eq.s32.totalorder %s16, 0
      %p170 = por %p168, %p169
      %p171 = scmp.ne.s32.totalorder %s157, %s158
      %p172 = scmp.eq.s32.totalorder %s17, 1
      %p173 = por %p171, %p172
      %p175 = scmp.ne.s32.totalorder %s158, %s174
      %p176 = scmp.eq.s32.totalorder %s17, 0
      %p177 = por %p175, %p176
      %p178 = scmp.le.s32.totalorder 1, %s11
      %p179 = scmp.lt.s32.totalorder %s11, 3
      %p180 = pnand %p178, %p179
      %p181 = pneg %p180
      // Predicated region
      $region9: #{fused_forward.1} parent=5 // pred_check
        _
      $region10: #{fused_forward.1} parent=5 // pred_check_branch
        %183 = sbr.rel (%p180) target = $region12
      $region11: #{fused_forward.1} parent=5 // pred_region
        %s184 = ssub.s32 %s11, 1
        // Predicated region
        $region13: #{fused_forward.1} parent=11 // pred_check
          %p185 = pneg %p100
        $region14: #{fused_forward.1} parent=11 // pred_check_branch
          %187 = sbr.rel (%p185) target = $region16
        $region15: #{fused_forward.1} parent=11 // pred_region
          _
        $region16: #{fused_forward.1} parent=11 // pred_fallthru
          _
        // Predicated region
        $region17: #{fused_forward.1} parent=11 // pred_check
          %p188 = pneg %p121
        $region18: #{fused_forward.1} parent=11 // pred_check_branch
          %190 = sbr.rel (%p188) target = $region20
        $region19: #{fused_forward.1} parent=11 // pred_region
          _
        $region20: #{fused_forward.1} parent=11 // pred_fallthru
          _
        // Predicated region
        $region21: #{fused_forward.1} parent=11 // pred_check
          %p191 = pneg %p142
        $region22: #{fused_forward.1} parent=11 // pred_check_branch
          %193 = sbr.rel (%p191) target = $region24
        $region23: #{fused_forward.1} parent=11 // pred_region
          _
        $region24: #{fused_forward.1} parent=11 // pred_fallthru
          _
      $region12: #{fused_forward.1} parent=5 // pred_fallthru
        _
      %p194 = scmp.lt.s32.totalorder %s11, 2
      // Predicated region
      $region25: #{fused_forward.1} parent=5 // pred_check
        %p195 = pneg %p194
      $region26: #{fused_forward.1} parent=5 // pred_check_branch
        %197 = sbr.rel (%p195) target = $region28
      $region27: #{fused_forward.1} parent=5 // pred_region
        // Predicated region
        $region29: #{fused_forward.1} parent=27 // pred_check
          %p198 = pneg %p45
        $region30: #{fused_forward.1} parent=27 // pred_check_branch
          %200 = sbr.rel (%p198) target = $region32
        $region31: #{fused_forward.1} parent=27 // pred_region
          %s201 = sand.u32 %s35, 1
          %s202 = sand.u32 %s35, 1
          %s203 = smul.addr %s202, 512
          %s204 = scalar_lea.vmem [#allocation2], %s203
          %s205 = smul.u32 4, %s19
          %s206 = ssub.s32 7, %s205
          %p207 = scmp.lt.s32.totalorder %s206, 4
          %s208 = scalar_select %p207, %s206, 4
          %s209 = smul.u32 128, %s208
          %p210 = scmp.ne.s32.totalorder 0, %s209
          %s211 = smul.addr %s18, 112
          %s212 = sadd.s32 %s205, %s211
          %s213 = smul.addr %s212, 8
          %s214 = scalar_lea.vmem %s0, %s213
          %s215 = smul.u32 %s208, 8
          // Predicated region
          $region33: #{fused_forward.1} parent=31 // pred_check
            %p216 = pneg %p210
          $region34: #{fused_forward.1} parent=31 // pred_check_branch
            %218 = sbr.rel (%p216) target = $region36
          $region35: #{fused_forward.1} parent=31 // pred_region
            %p219 = scmp.lt.u32.totalorder %s215, 8
            %p220 = pneg %p219
            // Predicated region
            $region37: #{fused_forward.1} parent=35 // pred_check
              _
            $region38: #{fused_forward.1} parent=35 // pred_check_branch
              %222 = sbr.rel (%p219) target = $region40
            $region39: #{fused_forward.1} parent=35 // pred_region
              %s268 = sand.u32 %s215, 7
              %p269 = scmp.eq.s32.totalorder %s268, 0
              // Predicated region
              $region52: #{fused_forward.1} parent=39 // pred_check
                %p270 = pneg %p269
              $region53: #{fused_forward.1} parent=39 // pred_check_branch
                %272 = sbr.rel (%p270) target = $region55
              $region54: #{fused_forward.1} parent=39 // pred_region
                %s273 = sshrl.u32 %s215, 3
                %s274 = sshrl.u32 %s273, 1
                // While loop
                $region56: #{fused_forward.1} parent=54 // loop_pre_header
                  _
                $region57: #{fused_forward.1} parent=54 // loop_header
                  %s276 = sphi 0, %s278
                  %p277 = scmp.ge.s32.totalorder %s276, %s274
                  %s281 = sphi 0, %s350
                  %s282 = sphi %s214, %s353
                  %s283 = sphi %s204, %s354
                $region58: #{fused_forward.1} parent=54 // loop_header_branch
                  %280 = sbr.rel (%p277) target = $region62
                $region59: #{fused_forward.1} parent=54 // loop_body
                  %v284 = vld [vmem:[%s282] sm:$0xff]
                  %285 = vst [vmem:[%s283] sm:$0xff] %v284
                  %v286 = vld [vmem:[%s282 + $0x8] sm:$0xff]
                  %287 = vst [vmem:[%s283 + $0x8] sm:$0xff] %v286
                  %v288 = vld [vmem:[%s282 + $0x38] sm:$0xff]
                  %289 = vst [vmem:[%s283 + $0x20] sm:$0xff] %v288
                  %v290 = vld [vmem:[%s282 + $0x40] sm:$0xff]
                  %291 = vst [vmem:[%s283 + $0x28] sm:$0xff] %v290
                  %v292 = vld [vmem:[%s282 + $0x70] sm:$0xff]
                  %293 = vst [vmem:[%s283 + $0x40] sm:$0xff] %v292
                  %v294 = vld [vmem:[%s282 + $0x78] sm:$0xff]
                  %295 = vst [vmem:[%s283 + $0x48] sm:$0xff] %v294
                  %v296 = vld [vmem:[%s282 + $0xa8] sm:$0xff]
                  %297 = vst [vmem:[%s283 + $0x60] sm:$0xff] %v296
                  %v298 = vld [vmem:[%s282 + $0xb0] sm:$0xff]
                  %299 = vst [vmem:[%s283 + $0x68] sm:$0xff] %v298
                  %v300 = vld [vmem:[%s282 + $0xe0] sm:$0xff]
                  %301 = vst [vmem:[%s283 + $0x80] sm:$0xff] %v300
                  %v302 = vld [vmem:[%s282 + $0xe8] sm:$0xff]
                  %303 = vst [vmem:[%s283 + $0x88] sm:$0xff] %v302
                  %v304 = vld [vmem:[%s282 + $0x118] sm:$0xff]
                  %305 = vst [vmem:[%s283 + $0xa0] sm:$0xff] %v304
                  %v306 = vld [vmem:[%s282 + $0x120] sm:$0xff]
                  %307 = vst [vmem:[%s283 + $0xa8] sm:$0xff] %v306
                  %v308 = vld [vmem:[%s282 + $0x150] sm:$0xff]
                  %309 = vst [vmem:[%s283 + $0xc0] sm:$0xff] %v308
                  %v310 = vld [vmem:[%s282 + $0x158] sm:$0xff]
                  %311 = vst [vmem:[%s283 + $0xc8] sm:$0xff] %v310
                  %v312 = vld [vmem:[%s282 + $0x188] sm:$0xff]
                  %313 = vst [vmem:[%s283 + $0xe0] sm:$0xff] %v312
                  %v314 = vld [vmem:[%s282 + $0x190] sm:$0xff]
                  %315 = vst [vmem:[%s283 + $0xe8] sm:$0xff] %v314
                  %v316 = vld [vmem:[%s282 + $0x1c0] sm:$0xff]
                  %317 = vst [vmem:[%s283 + $0x100] sm:$0xff] %v316
                  %v318 = vld [vmem:[%s282 + $0x1c8] sm:$0xff]
                  %319 = vst [vmem:[%s283 + $0x108] sm:$0xff] %v318
                  %v320 = vld [vmem:[%s282 + $0x1f8] sm:$0xff]
                  %321 = vst [vmem:[%s283 + $0x120] sm:$0xff] %v320
                  %v322 = vld [vmem:[%s282 + $0x200] sm:$0xff]
                  %323 = vst [vmem:[%s283 + $0x128] sm:$0xff] %v322
                  %v324 = vld [vmem:[%s282 + $0x230] sm:$0xff]
                  %325 = vst [vmem:[%s283 + $0x140] sm:$0xff] %v324
                  %v326 = vld [vmem:[%s282 + $0x238] sm:$0xff]
                  %327 = vst [vmem:[%s283 + $0x148] sm:$0xff] %v326
                  %v328 = vld [vmem:[%s282 + $0x268] sm:$0xff]
                  %329 = vst [vmem:[%s283 + $0x160] sm:$0xff] %v328
                  %v330 = vld [vmem:[%s282 + $0x270] sm:$0xff]
                  %331 = vst [vmem:[%s283 + $0x168] sm:$0xff] %v330
                  %v332 = vld [vmem:[%s282 + $0x2a0] sm:$0xff]
                  %333 = vst [vmem:[%s283 + $0x180] sm:$0xff] %v332
                  %v334 = vld [vmem:[%s282 + $0x2a8] sm:$0xff]
                  %335 = vst [vmem:[%s283 + $0x188] sm:$0xff] %v334
                  %v336 = vld [vmem:[%s282 + $0x2d8] sm:$0xff]
                  %337 = vst [vmem:[%s283 + $0x1a0] sm:$0xff] %v336
                  %v338 = vld [vmem:[%s282 + $0x2e0] sm:$0xff]
                  %339 = vst [vmem:[%s283 + $0x1a8] sm:$0xff] %v338
                  %v340 = vld [vmem:[%s282 + $0x310] sm:$0xff]
                  %341 = vst [vmem:[%s283 + $0x1c0] sm:$0xff] %v340
                  %v342 = vld [vmem:[%s282 + $0x318] sm:$0xff]
                  %343 = vst [vmem:[%s283 + $0x1c8] sm:$0xff] %v342
                  %v344 = vld [vmem:[%s282 + $0x348] sm:$0xff]
                  %345 = vst [vmem:[%s283 + $0x1e0] sm:$0xff] %v344
                  %v346 = vld [vmem:[%s282 + $0x350] sm:$0xff]
                  %347 = vst [vmem:[%s283 + $0x1e8] sm:$0xff] %v346
                  %s348 = sadd.s32 1, %s281
                  %p349 = scmp.ge.s32.totalorder %s348, %s274
                  %s350 = scalar_select %p349, 0, %s348
                  %s351 = smul.u32 %s350, 16
                  %s352 = smul.u32 %s350, 16
                  %s353 = scalar_lea.vmem %s214, %s351
                  %s354 = scalar_lea.vmem %s204, %s352 [#allocation2]
                $region60: #{fused_forward.1} parent=54 // loop_footer
                  %s278 = sadd.s32 %s276, 1
                $region61: #{fused_forward.1} parent=54 // loop_footer_branch
                  %275 = sbr.rel target = $region57
                $region62: #{fused_forward.1} parent=54 // loop_exit
                  _
                %s355 = sshrl.u32 %s273, 1
                %s356 = sand.u32 %s273, 1
                %s357 = smul.u32 %s355, 2
                %s358 = smul.u32 8, %s357
                %s359 = scalar_lea.vmem %s214, %s358
                %s360 = smul.u32 8, %s357
                %s361 = scalar_lea.vmem %s204, %s360 [#allocation2]
                // While loop
                $region63: #{fused_forward.1} parent=54 // loop_pre_header
                  _
                $region64: #{fused_forward.1} parent=54 // loop_header
                  %s363 = sphi 0, %s365
                  %p364 = scmp.ge.s32.totalorder %s363, %s356
                  %s368 = sphi 0, %s405
                  %s369 = sphi %s359, %s408
                  %s370 = sphi %s361, %s409
                $region65: #{fused_forward.1} parent=54 // loop_header_branch
                  %367 = sbr.rel (%p364) target = $region69
                $region66: #{fused_forward.1} parent=54 // loop_body
                  %v371 = vld [vmem:[%s369] sm:$0xff]
                  %372 = vst [vmem:[%s370] sm:$0xff] %v371
                  %v373 = vld [vmem:[%s369 + $0x38] sm:$0xff]
                  %374 = vst [vmem:[%s370 + $0x20] sm:$0xff] %v373
                  %v375 = vld [vmem:[%s369 + $0x70] sm:$0xff]
                  %376 = vst [vmem:[%s370 + $0x40] sm:$0xff] %v375
                  %v377 = vld [vmem:[%s369 + $0xa8] sm:$0xff]
                  %378 = vst [vmem:[%s370 + $0x60] sm:$0xff] %v377
                  %v379 = vld [vmem:[%s369 + $0xe0] sm:$0xff]
                  %380 = vst [vmem:[%s370 + $0x80] sm:$0xff] %v379
                  %v381 = vld [vmem:[%s369 + $0x118] sm:$0xff]
                  %382 = vst [vmem:[%s370 + $0xa0] sm:$0xff] %v381
                  %v383 = vld [vmem:[%s369 + $0x150] sm:$0xff]
                  %384 = vst [vmem:[%s370 + $0xc0] sm:$0xff] %v383
                  %v385 = vld [vmem:[%s369 + $0x188] sm:$0xff]
                  %386 = vst [vmem:[%s370 + $0xe0] sm:$0xff] %v385
                  %v387 = vld [vmem:[%s369 + $0x1c0] sm:$0xff]
                  %388 = vst [vmem:[%s370 + $0x100] sm:$0xff] %v387
                  %v389 = vld [vmem:[%s369 + $0x1f8] sm:$0xff]
                  %390 = vst [vmem:[%s370 + $0x120] sm:$0xff] %v389
                  %v391 = vld [vmem:[%s369 + $0x230] sm:$0xff]
                  %392 = vst [vmem:[%s370 + $0x140] sm:$0xff] %v391
                  %v393 = vld [vmem:[%s369 + $0x268] sm:$0xff]
                  %394 = vst [vmem:[%s370 + $0x160] sm:$0xff] %v393
                  %v395 = vld [vmem:[%s369 + $0x2a0] sm:$0xff]
                  %396 = vst [vmem:[%s370 + $0x180] sm:$0xff] %v395
                  %v397 = vld [vmem:[%s369 + $0x2d8] sm:$0xff]
                  %398 = vst [vmem:[%s370 + $0x1a0] sm:$0xff] %v397
                  %v399 = vld [vmem:[%s369 + $0x310] sm:$0xff]
                  %400 = vst [vmem:[%s370 + $0x1c0] sm:$0xff] %v399
                  %v401 = vld [vmem:[%s369 + $0x348] sm:$0xff]
                  %402 = vst [vmem:[%s370 + $0x1e0] sm:$0xff] %v401
                  %s403 = sadd.s32 1, %s368
                  %p404 = scmp.ge.s32.totalorder %s403, %s356
                  %s405 = scalar_select %p404, 0, %s403
                  %s406 = smul.u32 %s405, 8
                  %s407 = smul.u32 %s405, 8
                  %s408 = scalar_lea.vmem %s359, %s406
                  %s409 = scalar_lea.vmem %s361, %s407 [#allocation2]
                $region67: #{fused_forward.1} parent=54 // loop_footer
                  %s365 = sadd.s32 %s363, 1
                $region68: #{fused_forward.1} parent=54 // loop_footer_branch
                  %362 = sbr.rel target = $region64
                $region69: #{fused_forward.1} parent=54 // loop_exit
                  _
              $region55: #{fused_forward.1} parent=39 // pred_fallthru
                _
              %p410 = pneg %p269
              // Predicated region
              $region70: #{fused_forward.1} parent=39 // pred_check
                _
              $region71: #{fused_forward.1} parent=39 // pred_check_branch
                %412 = sbr.rel (%p269) target = $region73
              $region72: #{fused_forward.1} parent=39 // pred_region
                %s413 = sand.u32 %s215, 7
                %s414 = ssub.s32 %s215, %s413
                %s415 = scalar_lea.vmem %s214, %s414
                %s416 = ssub.s32 %s215, %s413
                %s417 = scalar_lea.vmem %s204, %s416 [#allocation2]
                %s418 = sshrl.u32 %s215, 3
                %s419 = sshrl.u32 %s418, 1
                // While loop
                $region74: #{fused_forward.1} parent=72 // loop_pre_header
                  _
                $region75: #{fused_forward.1} parent=72 // loop_header
                  %s421 = sphi 0, %s423
                  %p422 = scmp.ge.s32.totalorder %s421, %s419
                  %s426 = sphi 0, %s495
                  %s427 = sphi %s214, %s498
                  %s428 = sphi %s204, %s499
                $region76: #{fused_forward.1} parent=72 // loop_header_branch
                  %425 = sbr.rel (%p422) target = $region80
                $region77: #{fused_forward.1} parent=72 // loop_body
                  %v429 = vld [vmem:[%s427] sm:$0xff]
                  %430 = vst [vmem:[%s428] sm:$0xff] %v429
                  %v431 = vld [vmem:[%s427 + $0x8] sm:$0xff]
                  %432 = vst [vmem:[%s428 + $0x8] sm:$0xff] %v431
                  %v433 = vld [vmem:[%s427 + $0x38] sm:$0xff]
                  %434 = vst [vmem:[%s428 + $0x20] sm:$0xff] %v433
                  %v435 = vld [vmem:[%s427 + $0x40] sm:$0xff]
                  %436 = vst [vmem:[%s428 + $0x28] sm:$0xff] %v435
                  %v437 = vld [vmem:[%s427 + $0x70] sm:$0xff]
                  %438 = vst [vmem:[%s428 + $0x40] sm:$0xff] %v437
                  %v439 = vld [vmem:[%s427 + $0x78] sm:$0xff]
                  %440 = vst [vmem:[%s428 + $0x48] sm:$0xff] %v439
                  %v441 = vld [vmem:[%s427 + $0xa8] sm:$0xff]
                  %442 = vst [vmem:[%s428 + $0x60] sm:$0xff] %v441
                  %v443 = vld [vmem:[%s427 + $0xb0] sm:$0xff]
                  %444 = vst [vmem:[%s428 + $0x68] sm:$0xff] %v443
                  %v445 = vld [vmem:[%s427 + $0xe0] sm:$0xff]
                  %446 = vst [vmem:[%s428 + $0x80] sm:$0xff] %v445
                  %v447 = vld [vmem:[%s427 + $0xe8] sm:$0xff]
                  %448 = vst [vmem:[%s428 + $0x88] sm:$0xff] %v447
                  %v449 = vld [vmem:[%s427 + $0x118] sm:$0xff]
                  %450 = vst [vmem:[%s428 + $0xa0] sm:$0xff] %v449
                  %v451 = vld [vmem:[%s427 + $0x120] sm:$0xff]
                  %452 = vst [vmem:[%s428 + $0xa8] sm:$0xff] %v451
                  %v453 = vld [vmem:[%s427 + $0x150] sm:$0xff]
                  %454 = vst [vmem:[%s428 + $0xc0] sm:$0xff] %v453
                  %v455 = vld [vmem:[%s427 + $0x158] sm:$0xff]
                  %456 = vst [vmem:[%s428 + $0xc8] sm:$0xff] %v455
                  %v457 = vld [vmem:[%s427 + $0x188] sm:$0xff]
                  %458 = vst [vmem:[%s428 + $0xe0] sm:$0xff] %v457
                  %v459 = vld [vmem:[%s427 + $0x190] sm:$0xff]
                  %460 = vst [vmem:[%s428 + $0xe8] sm:$0xff] %v459
                  %v461 = vld [vmem:[%s427 + $0x1c0] sm:$0xff]
                  %462 = vst [vmem:[%s428 + $0x100] sm:$0xff] %v461
                  %v463 = vld [vmem:[%s427 + $0x1c8] sm:$0xff]
                  %464 = vst [vmem:[%s428 + $0x108] sm:$0xff] %v463
                  %v465 = vld [vmem:[%s427 + $0x1f8] sm:$0xff]
                  %466 = vst [vmem:[%s428 + $0x120] sm:$0xff] %v465
                  %v467 = vld [vmem:[%s427 + $0x200] sm:$0xff]
                  %468 = vst [vmem:[%s428 + $0x128] sm:$0xff] %v467
                  %v469 = vld [vmem:[%s427 + $0x230] sm:$0xff]
                  %470 = vst [vmem:[%s428 + $0x140] sm:$0xff] %v469
                  %v471 = vld [vmem:[%s427 + $0x238] sm:$0xff]
                  %472 = vst [vmem:[%s428 + $0x148] sm:$0xff] %v471
                  %v473 = vld [vmem:[%s427 + $0x268] sm:$0xff]
                  %474 = vst [vmem:[%s428 + $0x160] sm:$0xff] %v473
                  %v475 = vld [vmem:[%s427 + $0x270] sm:$0xff]
                  %476 = vst [vmem:[%s428 + $0x168] sm:$0xff] %v475
                  %v477 = vld [vmem:[%s427 + $0x2a0] sm:$0xff]
                  %478 = vst [vmem:[%s428 + $0x180] sm:$0xff] %v477
                  %v479 = vld [vmem:[%s427 + $0x2a8] sm:$0xff]
                  %480 = vst [vmem:[%s428 + $0x188] sm:$0xff] %v479
                  %v481 = vld [vmem:[%s427 + $0x2d8] sm:$0xff]
                  %482 = vst [vmem:[%s428 + $0x1a0] sm:$0xff] %v481
                  %v483 = vld [vmem:[%s427 + $0x2e0] sm:$0xff]
                  %484 = vst [vmem:[%s428 + $0x1a8] sm:$0xff] %v483
                  %v485 = vld [vmem:[%s427 + $0x310] sm:$0xff]
                  %486 = vst [vmem:[%s428 + $0x1c0] sm:$0xff] %v485
                  %v487 = vld [vmem:[%s427 + $0x318] sm:$0xff]
                  %488 = vst [vmem:[%s428 + $0x1c8] sm:$0xff] %v487
                  %v489 = vld [vmem:[%s427 + $0x348] sm:$0xff]
                  %490 = vst [vmem:[%s428 + $0x1e0] sm:$0xff] %v489
                  %v491 = vld [vmem:[%s427 + $0x350] sm:$0xff]
                  %492 = vst [vmem:[%s428 + $0x1e8] sm:$0xff] %v491
                  %s493 = sadd.s32 1, %s426
                  %p494 = scmp.ge.s32.totalorder %s493, %s419
                  %s495 = scalar_select %p494, 0, %s493
                  %s496 = smul.u32 %s495, 16
                  %s497 = smul.u32 %s495, 16
                  %s498 = scalar_lea.vmem %s214, %s496
                  %s499 = scalar_lea.vmem %s204, %s497 [#allocation2]
                $region78: #{fused_forward.1} parent=72 // loop_footer
                  %s423 = sadd.s32 %s421, 1
                $region79: #{fused_forward.1} parent=72 // loop_footer_branch
                  %420 = sbr.rel target = $region75
                $region80: #{fused_forward.1} parent=72 // loop_exit
                  _
                %s500 = sshrl.u32 %s418, 1
                %s501 = sand.u32 %s418, 1
                %s502 = smul.u32 %s500, 2
                %s503 = smul.u32 8, %s502
                %s504 = scalar_lea.vmem %s214, %s503
                %s505 = smul.u32 8, %s502
                %s506 = scalar_lea.vmem %s204, %s505 [#allocation2]
                // While loop
                $region81: #{fused_forward.1} parent=72 // loop_pre_header
                  _
                $region82: #{fused_forward.1} parent=72 // loop_header
                  %s508 = sphi 0, %s510
                  %p509 = scmp.ge.s32.totalorder %s508, %s501
                  %s513 = sphi 0, %s550
                  %s514 = sphi %s504, %s553
                  %s515 = sphi %s506, %s554
                $region83: #{fused_forward.1} parent=72 // loop_header_branch
                  %512 = sbr.rel (%p509) target = $region87
                $region84: #{fused_forward.1} parent=72 // loop_body
                  %v516 = vld [vmem:[%s514] sm:$0xff]
                  %517 = vst [vmem:[%s515] sm:$0xff] %v516
                  %v518 = vld [vmem:[%s514 + $0x38] sm:$0xff]
                  %519 = vst [vmem:[%s515 + $0x20] sm:$0xff] %v518
                  %v520 = vld [vmem:[%s514 + $0x70] sm:$0xff]
                  %521 = vst [vmem:[%s515 + $0x40] sm:$0xff] %v520
                  %v522 = vld [vmem:[%s514 + $0xa8] sm:$0xff]
                  %523 = vst [vmem:[%s515 + $0x60] sm:$0xff] %v522
                  %v524 = vld [vmem:[%s514 + $0xe0] sm:$0xff]
                  %525 = vst [vmem:[%s515 + $0x80] sm:$0xff] %v524
                  %v526 = vld [vmem:[%s514 + $0x118] sm:$0xff]
                  %527 = vst [vmem:[%s515 + $0xa0] sm:$0xff] %v526
                  %v528 = vld [vmem:[%s514 + $0x150] sm:$0xff]
                  %529 = vst [vmem:[%s515 + $0xc0] sm:$0xff] %v528
                  %v530 = vld [vmem:[%s514 + $0x188] sm:$0xff]
                  %531 = vst [vmem:[%s515 + $0xe0] sm:$0xff] %v530
                  %v532 = vld [vmem:[%s514 + $0x1c0] sm:$0xff]
                  %533 = vst [vmem:[%s515 + $0x100] sm:$0xff] %v532
                  %v534 = vld [vmem:[%s514 + $0x1f8] sm:$0xff]
                  %535 = vst [vmem:[%s515 + $0x120] sm:$0xff] %v534
                  %v536 = vld [vmem:[%s514 + $0x230] sm:$0xff]
                  %537 = vst [vmem:[%s515 + $0x140] sm:$0xff] %v536
                  %v538 = vld [vmem:[%s514 + $0x268] sm:$0xff]
                  %539 = vst [vmem:[%s515 + $0x160] sm:$0xff] %v538
                  %v540 = vld [vmem:[%s514 + $0x2a0] sm:$0xff]
                  %541 = vst [vmem:[%s515 + $0x180] sm:$0xff] %v540
                  %v542 = vld [vmem:[%s514 + $0x2d8] sm:$0xff]
                  %543 = vst [vmem:[%s515 + $0x1a0] sm:$0xff] %v542
                  %v544 = vld [vmem:[%s514 + $0x310] sm:$0xff]
                  %545 = vst [vmem:[%s515 + $0x1c0] sm:$0xff] %v544
                  %v546 = vld [vmem:[%s514 + $0x348] sm:$0xff]
                  %547 = vst [vmem:[%s515 + $0x1e0] sm:$0xff] %v546
                  %s548 = sadd.s32 1, %s513
                  %p549 = scmp.ge.s32.totalorder %s548, %s501
                  %s550 = scalar_select %p549, 0, %s548
                  %s551 = smul.u32 %s550, 8
                  %s552 = smul.u32 %s550, 8
                  %s553 = scalar_lea.vmem %s504, %s551
                  %s554 = scalar_lea.vmem %s506, %s552 [#allocation2]
                $region85: #{fused_forward.1} parent=72 // loop_footer
                  %s510 = sadd.s32 %s508, 1
                $region86: #{fused_forward.1} parent=72 // loop_footer_branch
                  %507 = sbr.rel target = $region82
                $region87: #{fused_forward.1} parent=72 // loop_exit
                  _
                %s555 = sshll.u32 1, %s413
                %s556 = ssub.s32 %s555, 1
                loop: start=0, step=1, limit=1
                $region88: #{fused_forward.1} parent=72 // loop_pre_header
                  _
                $region89: #{fused_forward.1} parent=72 // loop_header
                  %s558 = sphi 0, %s562
                  %p559 = scmp.ge.s32.totalorder %s558, 1
                  %s563 = sphi %s415, %s415
                  %s564 = sphi %s417, %s417
                $region90: #{fused_forward.1} parent=72 // loop_header_branch
                  %561 = sbr.rel (%p559) target = $region94
                $region91: #{fused_forward.1} parent=72 // loop_body
                  %v565 = vld [vmem:[%s563] sm:%s556]
                  %566 = vst [vmem:[%s564] sm:%s556] %v565
                  %v567 = vld [vmem:[%s563 + $0x38] sm:%s556]
                  %568 = vst [vmem:[%s564 + $0x20] sm:%s556] %v567
                  %v569 = vld [vmem:[%s563 + $0x70] sm:%s556]
                  %570 = vst [vmem:[%s564 + $0x40] sm:%s556] %v569
                  %v571 = vld [vmem:[%s563 + $0xa8] sm:%s556]
                  %572 = vst [vmem:[%s564 + $0x60] sm:%s556] %v571
                  %v573 = vld [vmem:[%s563 + $0xe0] sm:%s556]
                  %574 = vst [vmem:[%s564 + $0x80] sm:%s556] %v573
                  %v575 = vld [vmem:[%s563 + $0x118] sm:%s556]
                  %576 = vst [vmem:[%s564 + $0xa0] sm:%s556] %v575
                  %v577 = vld [vmem:[%s563 + $0x150] sm:%s556]
                  %578 = vst [vmem:[%s564 + $0xc0] sm:%s556] %v577
                  %v579 = vld [vmem:[%s563 + $0x188] sm:%s556]
                  %580 = vst [vmem:[%s564 + $0xe0] sm:%s556] %v579
                  %v581 = vld [vmem:[%s563 + $0x1c0] sm:%s556]
                  %582 = vst [vmem:[%s564 + $0x100] sm:%s556] %v581
                  %v583 = vld [vmem:[%s563 + $0x1f8] sm:%s556]
                  %584 = vst [vmem:[%s564 + $0x120] sm:%s556] %v583
                  %v585 = vld [vmem:[%s563 + $0x230] sm:%s556]
                  %586 = vst [vmem:[%s564 + $0x140] sm:%s556] %v585
                  %v587 = vld [vmem:[%s563 + $0x268] sm:%s556]
                  %588 = vst [vmem:[%s564 + $0x160] sm:%s556] %v587
                  %v589 = vld [vmem:[%s563 + $0x2a0] sm:%s556]
                  %590 = vst [vmem:[%s564 + $0x180] sm:%s556] %v589
                  %v591 = vld [vmem:[%s563 + $0x2d8] sm:%s556]
                  %592 = vst [vmem:[%s564 + $0x1a0] sm:%s556] %v591
                  %v593 = vld [vmem:[%s563 + $0x310] sm:%s556]
                  %594 = vst [vmem:[%s564 + $0x1c0] sm:%s556] %v593
                  %v595 = vld [vmem:[%s563 + $0x348] sm:%s556]
                  %596 = vst [vmem:[%s564 + $0x1e0] sm:%s556] %v595
                $region92: #{fused_forward.1} parent=72 // loop_footer
                  %s562 = sadd.s32 1, %s558
                $region93: #{fused_forward.1} parent=72 // loop_footer_branch
                  %557 = sbr.rel target = $region89
                $region94: #{fused_forward.1} parent=72 // loop_exit
                  _
              $region73: #{fused_forward.1} parent=39 // pred_fallthru
                _
            $region40: #{fused_forward.1} parent=35 // pred_fallthru
              _
            // Predicated region
            $region41: #{fused_forward.1} parent=35 // pred_check
              %p223 = pneg %p219
            $region42: #{fused_forward.1} parent=35 // pred_check_branch
              %225 = sbr.rel (%p223) target = $region44
            $region43: #{fused_forward.1} parent=35 // pred_region
              %s226 = sshll.u32 1, %s215
              %s227 = ssub.s32 %s226, 1
              loop: start=0, step=1, limit=1
              $region45: #{fused_forward.1} parent=43 // loop_pre_header
                _
              $region46: #{fused_forward.1} parent=43 // loop_header
                %s229 = sphi 0, %s233
                %p230 = scmp.ge.s32.totalorder %s229, 1
                %s234 = sphi %s214, %s214
                %s235 = sphi %s204, %s204
              $region47: #{fused_forward.1} parent=43 // loop_header_branch
                %232 = sbr.rel (%p230) target = $region51
              $region48: #{fused_forward.1} parent=43 // loop_body
                %v236 = vld [vmem:[%s234] sm:%s227]
                %237 = vst [vmem:[%s235] sm:%s227] %v236
                %v238 = vld [vmem:[%s234 + $0x38] sm:%s227]
                %239 = vst [vmem:[%s235 + $0x20] sm:%s227] %v238
                %v240 = vld [vmem:[%s234 + $0x70] sm:%s227]
                %241 = vst [vmem:[%s235 + $0x40] sm:%s227] %v240
                %v242 = vld [vmem:[%s234 + $0xa8] sm:%s227]
                %243 = vst [vmem:[%s235 + $0x60] sm:%s227] %v242
                %v244 = vld [vmem:[%s234 + $0xe0] sm:%s227]
                %245 = vst [vmem:[%s235 + $0x80] sm:%s227] %v244
                %v246 = vld [vmem:[%s234 + $0x118] sm:%s227]
                %247 = vst [vmem:[%s235 + $0xa0] sm:%s227] %v246
                %v248 = vld [vmem:[%s234 + $0x150] sm:%s227]
                %249 = vst [vmem:[%s235 + $0xc0] sm:%s227] %v248
                %v250 = vld [vmem:[%s234 + $0x188] sm:%s227]
                %251 = vst [vmem:[%s235 + $0xe0] sm:%s227] %v250
                %v252 = vld [vmem:[%s234 + $0x1c0] sm:%s227]
                %253 = vst [vmem:[%s235 + $0x100] sm:%s227] %v252
                %v254 = vld [vmem:[%s234 + $0x1f8] sm:%s227]
                %255 = vst [vmem:[%s235 + $0x120] sm:%s227] %v254
                %v256 = vld [vmem:[%s234 + $0x230] sm:%s227]
                %257 = vst [vmem:[%s235 + $0x140] sm:%s227] %v256
                %v258 = vld [vmem:[%s234 + $0x268] sm:%s227]
                %259 = vst [vmem:[%s235 + $0x160] sm:%s227] %v258
                %v260 = vld [vmem:[%s234 + $0x2a0] sm:%s227]
                %261 = vst [vmem:[%s235 + $0x180] sm:%s227] %v260
                %v262 = vld [vmem:[%s234 + $0x2d8] sm:%s227]
                %263 = vst [vmem:[%s235 + $0x1a0] sm:%s227] %v262
                %v264 = vld [vmem:[%s234 + $0x310] sm:%s227]
                %265 = vst [vmem:[%s235 + $0x1c0] sm:%s227] %v264
                %v266 = vld [vmem:[%s234 + $0x348] sm:%s227]
                %267 = vst [vmem:[%s235 + $0x1e0] sm:%s227] %v266
              $region49: #{fused_forward.1} parent=43 // loop_footer
                %s233 = sadd.s32 1, %s229
              $region50: #{fused_forward.1} parent=43 // loop_footer_branch
                %228 = sbr.rel target = $region46
              $region51: #{fused_forward.1} parent=43 // loop_exit
                _
            $region44: #{fused_forward.1} parent=35 // pred_fallthru
              _
          $region36: #{fused_forward.1} parent=31 // pred_fallthru
            _
          %597 = vnop
        $region32: #{fused_forward.1} parent=27 // pred_fallthru
          _
        // Predicated region
        $region95: #{fused_forward.1} parent=27 // pred_check
          %p598 = pneg %p73
        $region96: #{fused_forward.1} parent=27 // pred_check_branch
          %600 = sbr.rel (%p598) target = $region98
        $region97: #{fused_forward.1} parent=27 // pred_region
          %s601 = sand.u32 %s63, 1
          %s602 = sand.u32 %s63, 1
          %s603 = smul.addr %s602, 512
          %s604 = scalar_lea.vmem [#allocation3], %s603
          %s605 = smul.u32 4, %s19
          %s606 = ssub.s32 7, %s605
          %p607 = scmp.lt.s32.totalorder %s606, 4
          %s608 = scalar_select %p607, %s606, 4
          %s609 = smul.u32 128, %s608
          %p610 = scmp.ne.s32.totalorder 0, %s609
          %s611 = smul.addr %s18, 112
          %s612 = sadd.s32 %s605, %s611
          %s613 = smul.addr %s612, 8
          %s614 = scalar_lea.vmem %s1, %s613
          %s615 = smul.u32 %s608, 8
          // Predicated region
          $region99: #{fused_forward.1} parent=97 // pred_check
            %p616 = pneg %p610
          $region100: #{fused_forward.1} parent=97 // pred_check_branch
            %618 = sbr.rel (%p616) target = $region102
          $region101: #{fused_forward.1} parent=97 // pred_region
            %p619 = scmp.lt.u32.totalorder %s615, 8
            %p620 = pneg %p619
            // Predicated region
            $region103: #{fused_forward.1} parent=101 // pred_check
              _
            $region104: #{fused_forward.1} parent=101 // pred_check_branch
              %622 = sbr.rel (%p619) target = $region106
            $region105: #{fused_forward.1} parent=101 // pred_region
              %s668 = sand.u32 %s615, 7
              %p669 = scmp.eq.s32.totalorder %s668, 0
              // Predicated region
              $region118: #{fused_forward.1} parent=105 // pred_check
                %p670 = pneg %p669
              $region119: #{fused_forward.1} parent=105 // pred_check_branch
                %672 = sbr.rel (%p670) target = $region121
              $region120: #{fused_forward.1} parent=105 // pred_region
                %s673 = sshrl.u32 %s615, 3
                %s674 = sshrl.u32 %s673, 1
                // While loop
                $region122: #{fused_forward.1} parent=120 // loop_pre_header
                  _
                $region123: #{fused_forward.1} parent=120 // loop_header
                  %s676 = sphi 0, %s678
                  %p677 = scmp.ge.s32.totalorder %s676, %s674
                  %s681 = sphi 0, %s750
                  %s682 = sphi %s614, %s753
                  %s683 = sphi %s604, %s754
                $region124: #{fused_forward.1} parent=120 // loop_header_branch
                  %680 = sbr.rel (%p677) target = $region128
                $region125: #{fused_forward.1} parent=120 // loop_body
                  %v684 = vld [vmem:[%s682] sm:$0xff]
                  %685 = vst [vmem:[%s683] sm:$0xff] %v684
                  %v686 = vld [vmem:[%s682 + $0x8] sm:$0xff]
                  %687 = vst [vmem:[%s683 + $0x8] sm:$0xff] %v686
                  %v688 = vld [vmem:[%s682 + $0x38] sm:$0xff]
                  %689 = vst [vmem:[%s683 + $0x20] sm:$0xff] %v688
                  %v690 = vld [vmem:[%s682 + $0x40] sm:$0xff]
                  %691 = vst [vmem:[%s683 + $0x28] sm:$0xff] %v690
                  %v692 = vld [vmem:[%s682 + $0x70] sm:$0xff]
                  %693 = vst [vmem:[%s683 + $0x40] sm:$0xff] %v692
                  %v694 = vld [vmem:[%s682 + $0x78] sm:$0xff]
                  %695 = vst [vmem:[%s683 + $0x48] sm:$0xff] %v694
                  %v696 = vld [vmem:[%s682 + $0xa8] sm:$0xff]
                  %697 = vst [vmem:[%s683 + $0x60] sm:$0xff] %v696
                  %v698 = vld [vmem:[%s682 + $0xb0] sm:$0xff]
                  %699 = vst [vmem:[%s683 + $0x68] sm:$0xff] %v698
                  %v700 = vld [vmem:[%s682 + $0xe0] sm:$0xff]
                  %701 = vst [vmem:[%s683 + $0x80] sm:$0xff] %v700
                  %v702 = vld [vmem:[%s682 + $0xe8] sm:$0xff]
                  %703 = vst [vmem:[%s683 + $0x88] sm:$0xff] %v702
                  %v704 = vld [vmem:[%s682 + $0x118] sm:$0xff]
                  %705 = vst [vmem:[%s683 + $0xa0] sm:$0xff] %v704
                  %v706 = vld [vmem:[%s682 + $0x120] sm:$0xff]
                  %707 = vst [vmem:[%s683 + $0xa8] sm:$0xff] %v706
                  %v708 = vld [vmem:[%s682 + $0x150] sm:$0xff]
                  %709 = vst [vmem:[%s683 + $0xc0] sm:$0xff] %v708
                  %v710 = vld [vmem:[%s682 + $0x158] sm:$0xff]
                  %711 = vst [vmem:[%s683 + $0xc8] sm:$0xff] %v710
                  %v712 = vld [vmem:[%s682 + $0x188] sm:$0xff]
                  %713 = vst [vmem:[%s683 + $0xe0] sm:$0xff] %v712
                  %v714 = vld [vmem:[%s682 + $0x190] sm:$0xff]
                  %715 = vst [vmem:[%s683 + $0xe8] sm:$0xff] %v714
                  %v716 = vld [vmem:[%s682 + $0x1c0] sm:$0xff]
                  %717 = vst [vmem:[%s683 + $0x100] sm:$0xff] %v716
                  %v718 = vld [vmem:[%s682 + $0x1c8] sm:$0xff]
                  %719 = vst [vmem:[%s683 + $0x108] sm:$0xff] %v718
                  %v720 = vld [vmem:[%s682 + $0x1f8] sm:$0xff]
                  %721 = vst [vmem:[%s683 + $0x120] sm:$0xff] %v720
                  %v722 = vld [vmem:[%s682 + $0x200] sm:$0xff]
                  %723 = vst [vmem:[%s683 + $0x128] sm:$0xff] %v722
                  %v724 = vld [vmem:[%s682 + $0x230] sm:$0xff]
                  %725 = vst [vmem:[%s683 + $0x140] sm:$0xff] %v724
                  %v726 = vld [vmem:[%s682 + $0x238] sm:$0xff]
                  %727 = vst [vmem:[%s683 + $0x148] sm:$0xff] %v726
                  %v728 = vld [vmem:[%s682 + $0x268] sm:$0xff]
                  %729 = vst [vmem:[%s683 + $0x160] sm:$0xff] %v728
                  %v730 = vld [vmem:[%s682 + $0x270] sm:$0xff]
                  %731 = vst [vmem:[%s683 + $0x168] sm:$0xff] %v730
                  %v732 = vld [vmem:[%s682 + $0x2a0] sm:$0xff]
                  %733 = vst [vmem:[%s683 + $0x180] sm:$0xff] %v732
                  %v734 = vld [vmem:[%s682 + $0x2a8] sm:$0xff]
                  %735 = vst [vmem:[%s683 + $0x188] sm:$0xff] %v734
                  %v736 = vld [vmem:[%s682 + $0x2d8] sm:$0xff]
                  %737 = vst [vmem:[%s683 + $0x1a0] sm:$0xff] %v736
                  %v738 = vld [vmem:[%s682 + $0x2e0] sm:$0xff]
                  %739 = vst [vmem:[%s683 + $0x1a8] sm:$0xff] %v738
                  %v740 = vld [vmem:[%s682 + $0x310] sm:$0xff]
                  %741 = vst [vmem:[%s683 + $0x1c0] sm:$0xff] %v740
                  %v742 = vld [vmem:[%s682 + $0x318] sm:$0xff]
                  %743 = vst [vmem:[%s683 + $0x1c8] sm:$0xff] %v742
                  %v744 = vld [vmem:[%s682 + $0x348] sm:$0xff]
                  %745 = vst [vmem:[%s683 + $0x1e0] sm:$0xff] %v744
                  %v746 = vld [vmem:[%s682 + $0x350] sm:$0xff]
                  %747 = vst [vmem:[%s683 + $0x1e8] sm:$0xff] %v746
                  %s748 = sadd.s32 1, %s681
                  %p749 = scmp.ge.s32.totalorder %s748, %s674
                  %s750 = scalar_select %p749, 0, %s748
                  %s751 = smul.u32 %s750, 16
                  %s752 = smul.u32 %s750, 16
                  %s753 = scalar_lea.vmem %s614, %s751
                  %s754 = scalar_lea.vmem %s604, %s752 [#allocation3]
                $region126: #{fused_forward.1} parent=120 // loop_footer
                  %s678 = sadd.s32 %s676, 1
                $region127: #{fused_forward.1} parent=120 // loop_footer_branch
                  %675 = sbr.rel target = $region123
                $region128: #{fused_forward.1} parent=120 // loop_exit
                  _
                %s755 = sshrl.u32 %s673, 1
                %s756 = sand.u32 %s673, 1
                %s757 = smul.u32 %s755, 2
                %s758 = smul.u32 8, %s757
                %s759 = scalar_lea.vmem %s614, %s758
                %s760 = smul.u32 8, %s757
                %s761 = scalar_lea.vmem %s604, %s760 [#allocation3]
                // While loop
                $region129: #{fused_forward.1} parent=120 // loop_pre_header
                  _
                $region130: #{fused_forward.1} parent=120 // loop_header
                  %s763 = sphi 0, %s765
                  %p764 = scmp.ge.s32.totalorder %s763, %s756
                  %s768 = sphi 0, %s805
                  %s769 = sphi %s759, %s808
                  %s770 = sphi %s761, %s809
                $region131: #{fused_forward.1} parent=120 // loop_header_branch
                  %767 = sbr.rel (%p764) target = $region135
                $region132: #{fused_forward.1} parent=120 // loop_body
                  %v771 = vld [vmem:[%s769] sm:$0xff]
                  %772 = vst [vmem:[%s770] sm:$0xff] %v771
                  %v773 = vld [vmem:[%s769 + $0x38] sm:$0xff]
                  %774 = vst [vmem:[%s770 + $0x20] sm:$0xff] %v773
                  %v775 = vld [vmem:[%s769 + $0x70] sm:$0xff]
                  %776 = vst [vmem:[%s770 + $0x40] sm:$0xff] %v775
                  %v777 = vld [vmem:[%s769 + $0xa8] sm:$0xff]
                  %778 = vst [vmem:[%s770 + $0x60] sm:$0xff] %v777
                  %v779 = vld [vmem:[%s769 + $0xe0] sm:$0xff]
                  %780 = vst [vmem:[%s770 + $0x80] sm:$0xff] %v779
                  %v781 = vld [vmem:[%s769 + $0x118] sm:$0xff]
                  %782 = vst [vmem:[%s770 + $0xa0] sm:$0xff] %v781
                  %v783 = vld [vmem:[%s769 + $0x150] sm:$0xff]
                  %784 = vst [vmem:[%s770 + $0xc0] sm:$0xff] %v783
                  %v785 = vld [vmem:[%s769 + $0x188] sm:$0xff]
                  %786 = vst [vmem:[%s770 + $0xe0] sm:$0xff] %v785
                  %v787 = vld [vmem:[%s769 + $0x1c0] sm:$0xff]
                  %788 = vst [vmem:[%s770 + $0x100] sm:$0xff] %v787
                  %v789 = vld [vmem:[%s769 + $0x1f8] sm:$0xff]
                  %790 = vst [vmem:[%s770 + $0x120] sm:$0xff] %v789
                  %v791 = vld [vmem:[%s769 + $0x230] sm:$0xff]
                  %792 = vst [vmem:[%s770 + $0x140] sm:$0xff] %v791
                  %v793 = vld [vmem:[%s769 + $0x268] sm:$0xff]
                  %794 = vst [vmem:[%s770 + $0x160] sm:$0xff] %v793
                  %v795 = vld [vmem:[%s769 + $0x2a0] sm:$0xff]
                  %796 = vst [vmem:[%s770 + $0x180] sm:$0xff] %v795
                  %v797 = vld [vmem:[%s769 + $0x2d8] sm:$0xff]
                  %798 = vst [vmem:[%s770 + $0x1a0] sm:$0xff] %v797
                  %v799 = vld [vmem:[%s769 + $0x310] sm:$0xff]
                  %800 = vst [vmem:[%s770 + $0x1c0] sm:$0xff] %v799
                  %v801 = vld [vmem:[%s769 + $0x348] sm:$0xff]
                  %802 = vst [vmem:[%s770 + $0x1e0] sm:$0xff] %v801
                  %s803 = sadd.s32 1, %s768
                  %p804 = scmp.ge.s32.totalorder %s803, %s756
                  %s805 = scalar_select %p804, 0, %s803
                  %s806 = smul.u32 %s805, 8
                  %s807 = smul.u32 %s805, 8
                  %s808 = scalar_lea.vmem %s759, %s806
                  %s809 = scalar_lea.vmem %s761, %s807 [#allocation3]
                $region133: #{fused_forward.1} parent=120 // loop_footer
                  %s765 = sadd.s32 %s763, 1
                $region134: #{fused_forward.1} parent=120 // loop_footer_branch
                  %762 = sbr.rel target = $region130
                $region135: #{fused_forward.1} parent=120 // loop_exit
                  _
              $region121: #{fused_forward.1} parent=105 // pred_fallthru
                _
              %p810 = pneg %p669
              // Predicated region
              $region136: #{fused_forward.1} parent=105 // pred_check
                _
              $region137: #{fused_forward.1} parent=105 // pred_check_branch
                %812 = sbr.rel (%p669) target = $region139
              $region138: #{fused_forward.1} parent=105 // pred_region
                %s813 = sand.u32 %s615, 7
                %s814 = ssub.s32 %s615, %s813
                %s815 = scalar_lea.vmem %s614, %s814
                %s816 = ssub.s32 %s615, %s813
                %s817 = scalar_lea.vmem %s604, %s816 [#allocation3]
                %s818 = sshrl.u32 %s615, 3
                %s819 = sshrl.u32 %s818, 1
                // While loop
                $region140: #{fused_forward.1} parent=138 // loop_pre_header
                  _
                $region141: #{fused_forward.1} parent=138 // loop_header
                  %s821 = sphi 0, %s823
                  %p822 = scmp.ge.s32.totalorder %s821, %s819
                  %s826 = sphi 0, %s895
                  %s827 = sphi %s614, %s898
                  %s828 = sphi %s604, %s899
                $region142: #{fused_forward.1} parent=138 // loop_header_branch
                  %825 = sbr.rel (%p822) target = $region146
                $region143: #{fused_forward.1} parent=138 // loop_body
                  %v829 = vld [vmem:[%s827] sm:$0xff]
                  %830 = vst [vmem:[%s828] sm:$0xff] %v829
                  %v831 = vld [vmem:[%s827 + $0x8] sm:$0xff]
                  %832 = vst [vmem:[%s828 + $0x8] sm:$0xff] %v831
                  %v833 = vld [vmem:[%s827 + $0x38] sm:$0xff]
                  %834 = vst [vmem:[%s828 + $0x20] sm:$0xff] %v833
                  %v835 = vld [vmem:[%s827 + $0x40] sm:$0xff]
                  %836 = vst [vmem:[%s828 + $0x28] sm:$0xff] %v835
                  %v837 = vld [vmem:[%s827 + $0x70] sm:$0xff]
                  %838 = vst [vmem:[%s828 + $0x40] sm:$0xff] %v837
                  %v839 = vld [vmem:[%s827 + $0x78] sm:$0xff]
                  %840 = vst [vmem:[%s828 + $0x48] sm:$0xff] %v839
                  %v841 = vld [vmem:[%s827 + $0xa8] sm:$0xff]
                  %842 = vst [vmem:[%s828 + $0x60] sm:$0xff] %v841
                  %v843 = vld [vmem:[%s827 + $0xb0] sm:$0xff]
                  %844 = vst [vmem:[%s828 + $0x68] sm:$0xff] %v843
                  %v845 = vld [vmem:[%s827 + $0xe0] sm:$0xff]
                  %846 = vst [vmem:[%s828 + $0x80] sm:$0xff] %v845
                  %v847 = vld [vmem:[%s827 + $0xe8] sm:$0xff]
                  %848 = vst [vmem:[%s828 + $0x88] sm:$0xff] %v847
                  %v849 = vld [vmem:[%s827 + $0x118] sm:$0xff]
                  %850 = vst [vmem:[%s828 + $0xa0] sm:$0xff] %v849
                  %v851 = vld [vmem:[%s827 + $0x120] sm:$0xff]
                  %852 = vst [vmem:[%s828 + $0xa8] sm:$0xff] %v851
                  %v853 = vld [vmem:[%s827 + $0x150] sm:$0xff]
                  %854 = vst [vmem:[%s828 + $0xc0] sm:$0xff] %v853
                  %v855 = vld [vmem:[%s827 + $0x158] sm:$0xff]
                  %856 = vst [vmem:[%s828 + $0xc8] sm:$0xff] %v855
                  %v857 = vld [vmem:[%s827 + $0x188] sm:$0xff]
                  %858 = vst [vmem:[%s828 + $0xe0] sm:$0xff] %v857
                  %v859 = vld [vmem:[%s827 + $0x190] sm:$0xff]
                  %860 = vst [vmem:[%s828 + $0xe8] sm:$0xff] %v859
                  %v861 = vld [vmem:[%s827 + $0x1c0] sm:$0xff]
                  %862 = vst [vmem:[%s828 + $0x100] sm:$0xff] %v861
                  %v863 = vld [vmem:[%s827 + $0x1c8] sm:$0xff]
                  %864 = vst [vmem:[%s828 + $0x108] sm:$0xff] %v863
                  %v865 = vld [vmem:[%s827 + $0x1f8] sm:$0xff]
                  %866 = vst [vmem:[%s828 + $0x120] sm:$0xff] %v865
                  %v867 = vld [vmem:[%s827 + $0x200] sm:$0xff]
                  %868 = vst [vmem:[%s828 + $0x128] sm:$0xff] %v867
                  %v869 = vld [vmem:[%s827 + $0x230] sm:$0xff]
                  %870 = vst [vmem:[%s828 + $0x140] sm:$0xff] %v869
                  %v871 = vld [vmem:[%s827 + $0x238] sm:$0xff]
                  %872 = vst [vmem:[%s828 + $0x148] sm:$0xff] %v871
                  %v873 = vld [vmem:[%s827 + $0x268] sm:$0xff]
                  %874 = vst [vmem:[%s828 + $0x160] sm:$0xff] %v873
                  %v875 = vld [vmem:[%s827 + $0x270] sm:$0xff]
                  %876 = vst [vmem:[%s828 + $0x168] sm:$0xff] %v875
                  %v877 = vld [vmem:[%s827 + $0x2a0] sm:$0xff]
                  %878 = vst [vmem:[%s828 + $0x180] sm:$0xff] %v877
                  %v879 = vld [vmem:[%s827 + $0x2a8] sm:$0xff]
                  %880 = vst [vmem:[%s828 + $0x188] sm:$0xff] %v879
                  %v881 = vld [vmem:[%s827 + $0x2d8] sm:$0xff]
                  %882 = vst [vmem:[%s828 + $0x1a0] sm:$0xff] %v881
                  %v883 = vld [vmem:[%s827 + $0x2e0] sm:$0xff]
                  %884 = vst [vmem:[%s828 + $0x1a8] sm:$0xff] %v883
                  %v885 = vld [vmem:[%s827 + $0x310] sm:$0xff]
                  %886 = vst [vmem:[%s828 + $0x1c0] sm:$0xff] %v885
                  %v887 = vld [vmem:[%s827 + $0x318] sm:$0xff]
                  %888 = vst [vmem:[%s828 + $0x1c8] sm:$0xff] %v887
                  %v889 = vld [vmem:[%s827 + $0x348] sm:$0xff]
                  %890 = vst [vmem:[%s828 + $0x1e0] sm:$0xff] %v889
                  %v891 = vld [vmem:[%s827 + $0x350] sm:$0xff]
                  %892 = vst [vmem:[%s828 + $0x1e8] sm:$0xff] %v891
                  %s893 = sadd.s32 1, %s826
                  %p894 = scmp.ge.s32.totalorder %s893, %s819
                  %s895 = scalar_select %p894, 0, %s893
                  %s896 = smul.u32 %s895, 16
                  %s897 = smul.u32 %s895, 16
                  %s898 = scalar_lea.vmem %s614, %s896
                  %s899 = scalar_lea.vmem %s604, %s897 [#allocation3]
                $region144: #{fused_forward.1} parent=138 // loop_footer
                  %s823 = sadd.s32 %s821, 1
                $region145: #{fused_forward.1} parent=138 // loop_footer_branch
                  %820 = sbr.rel target = $region141
                $region146: #{fused_forward.1} parent=138 // loop_exit
                  _
                %s900 = sshrl.u32 %s818, 1
                %s901 = sand.u32 %s818, 1
                %s902 = smul.u32 %s900, 2
                %s903 = smul.u32 8, %s902
                %s904 = scalar_lea.vmem %s614, %s903
                %s905 = smul.u32 8, %s902
                %s906 = scalar_lea.vmem %s604, %s905 [#allocation3]
                // While loop
                $region147: #{fused_forward.1} parent=138 // loop_pre_header
                  _
                $region148: #{fused_forward.1} parent=138 // loop_header
                  %s908 = sphi 0, %s910
                  %p909 = scmp.ge.s32.totalorder %s908, %s901
                  %s913 = sphi 0, %s950
                  %s914 = sphi %s904, %s953
                  %s915 = sphi %s906, %s954
                $region149: #{fused_forward.1} parent=138 // loop_header_branch
                  %912 = sbr.rel (%p909) target = $region153
                $region150: #{fused_forward.1} parent=138 // loop_body
                  %v916 = vld [vmem:[%s914] sm:$0xff]
                  %917 = vst [vmem:[%s915] sm:$0xff] %v916
                  %v918 = vld [vmem:[%s914 + $0x38] sm:$0xff]
                  %919 = vst [vmem:[%s915 + $0x20] sm:$0xff] %v918
                  %v920 = vld [vmem:[%s914 + $0x70] sm:$0xff]
                  %921 = vst [vmem:[%s915 + $0x40] sm:$0xff] %v920
                  %v922 = vld [vmem:[%s914 + $0xa8] sm:$0xff]
                  %923 = vst [vmem:[%s915 + $0x60] sm:$0xff] %v922
                  %v924 = vld [vmem:[%s914 + $0xe0] sm:$0xff]
                  %925 = vst [vmem:[%s915 + $0x80] sm:$0xff] %v924
                  %v926 = vld [vmem:[%s914 + $0x118] sm:$0xff]
                  %927 = vst [vmem:[%s915 + $0xa0] sm:$0xff] %v926
                  %v928 = vld [vmem:[%s914 + $0x150] sm:$0xff]
                  %929 = vst [vmem:[%s915 + $0xc0] sm:$0xff] %v928
                  %v930 = vld [vmem:[%s914 + $0x188] sm:$0xff]
                  %931 = vst [vmem:[%s915 + $0xe0] sm:$0xff] %v930
                  %v932 = vld [vmem:[%s914 + $0x1c0] sm:$0xff]
                  %933 = vst [vmem:[%s915 + $0x100] sm:$0xff] %v932
                  %v934 = vld [vmem:[%s914 + $0x1f8] sm:$0xff]
                  %935 = vst [vmem:[%s915 + $0x120] sm:$0xff] %v934
                  %v936 = vld [vmem:[%s914 + $0x230] sm:$0xff]
                  %937 = vst [vmem:[%s915 + $0x140] sm:$0xff] %v936
                  %v938 = vld [vmem:[%s914 + $0x268] sm:$0xff]
                  %939 = vst [vmem:[%s915 + $0x160] sm:$0xff] %v938
                  %v940 = vld [vmem:[%s914 + $0x2a0] sm:$0xff]
                  %941 = vst [vmem:[%s915 + $0x180] sm:$0xff] %v940
                  %v942 = vld [vmem:[%s914 + $0x2d8] sm:$0xff]
                  %943 = vst [vmem:[%s915 + $0x1a0] sm:$0xff] %v942
                  %v944 = vld [vmem:[%s914 + $0x310] sm:$0xff]
                  %945 = vst [vmem:[%s915 + $0x1c0] sm:$0xff] %v944
                  %v946 = vld [vmem:[%s914 + $0x348] sm:$0xff]
                  %947 = vst [vmem:[%s915 + $0x1e0] sm:$0xff] %v946
                  %s948 = sadd.s32 1, %s913
                  %p949 = scmp.ge.s32.totalorder %s948, %s901
                  %s950 = scalar_select %p949, 0, %s948
                  %s951 = smul.u32 %s950, 8
                  %s952 = smul.u32 %s950, 8
                  %s953 = scalar_lea.vmem %s904, %s951
                  %s954 = scalar_lea.vmem %s906, %s952 [#allocation3]
                $region151: #{fused_forward.1} parent=138 // loop_footer
                  %s910 = sadd.s32 %s908, 1
                $region152: #{fused_forward.1} parent=138 // loop_footer_branch
                  %907 = sbr.rel target = $region148
                $region153: #{fused_forward.1} parent=138 // loop_exit
                  _
                %s955 = sshll.u32 1, %s813
                %s956 = ssub.s32 %s955, 1
                loop: start=0, step=1, limit=1
                $region154: #{fused_forward.1} parent=138 // loop_pre_header
                  _
                $region155: #{fused_forward.1} parent=138 // loop_header
                  %s958 = sphi 0, %s962
                  %p959 = scmp.ge.s32.totalorder %s958, 1
                  %s963 = sphi %s815, %s815
                  %s964 = sphi %s817, %s817
                $region156: #{fused_forward.1} parent=138 // loop_header_branch
                  %961 = sbr.rel (%p959) target = $region160
                $region157: #{fused_forward.1} parent=138 // loop_body
                  %v965 = vld [vmem:[%s963] sm:%s956]
                  %966 = vst [vmem:[%s964] sm:%s956] %v965
                  %v967 = vld [vmem:[%s963 + $0x38] sm:%s956]
                  %968 = vst [vmem:[%s964 + $0x20] sm:%s956] %v967
                  %v969 = vld [vmem:[%s963 + $0x70] sm:%s956]
                  %970 = vst [vmem:[%s964 + $0x40] sm:%s956] %v969
                  %v971 = vld [vmem:[%s963 + $0xa8] sm:%s956]
                  %972 = vst [vmem:[%s964 + $0x60] sm:%s956] %v971
                  %v973 = vld [vmem:[%s963 + $0xe0] sm:%s956]
                  %974 = vst [vmem:[%s964 + $0x80] sm:%s956] %v973
                  %v975 = vld [vmem:[%s963 + $0x118] sm:%s956]
                  %976 = vst [vmem:[%s964 + $0xa0] sm:%s956] %v975
                  %v977 = vld [vmem:[%s963 + $0x150] sm:%s956]
                  %978 = vst [vmem:[%s964 + $0xc0] sm:%s956] %v977
                  %v979 = vld [vmem:[%s963 + $0x188] sm:%s956]
                  %980 = vst [vmem:[%s964 + $0xe0] sm:%s956] %v979
                  %v981 = vld [vmem:[%s963 + $0x1c0] sm:%s956]
                  %982 = vst [vmem:[%s964 + $0x100] sm:%s956] %v981
                  %v983 = vld [vmem:[%s963 + $0x1f8] sm:%s956]
                  %984 = vst [vmem:[%s964 + $0x120] sm:%s956] %v983
                  %v985 = vld [vmem:[%s963 + $0x230] sm:%s956]
                  %986 = vst [vmem:[%s964 + $0x140] sm:%s956] %v985
                  %v987 = vld [vmem:[%s963 + $0x268] sm:%s956]
                  %988 = vst [vmem:[%s964 + $0x160] sm:%s956] %v987
                  %v989 = vld [vmem:[%s963 + $0x2a0] sm:%s956]
                  %990 = vst [vmem:[%s964 + $0x180] sm:%s956] %v989
                  %v991 = vld [vmem:[%s963 + $0x2d8] sm:%s956]
                  %992 = vst [vmem:[%s964 + $0x1a0] sm:%s956] %v991
                  %v993 = vld [vmem:[%s963 + $0x310] sm:%s956]
                  %994 = vst [vmem:[%s964 + $0x1c0] sm:%s956] %v993
                  %v995 = vld [vmem:[%s963 + $0x348] sm:%s956]
                  %996 = vst [vmem:[%s964 + $0x1e0] sm:%s956] %v995
                $region158: #{fused_forward.1} parent=138 // loop_footer
                  %s962 = sadd.s32 1, %s958
                $region159: #{fused_forward.1} parent=138 // loop_footer_branch
                  %957 = sbr.rel target = $region155
                $region160: #{fused_forward.1} parent=138 // loop_exit
                  _
              $region139: #{fused_forward.1} parent=105 // pred_fallthru
                _
            $region106: #{fused_forward.1} parent=101 // pred_fallthru
              _
            // Predicated region
            $region107: #{fused_forward.1} parent=101 // pred_check
              %p623 = pneg %p619
            $region108: #{fused_forward.1} parent=101 // pred_check_branch
              %625 = sbr.rel (%p623) target = $region110
            $region109: #{fused_forward.1} parent=101 // pred_region
              %s626 = sshll.u32 1, %s615
              %s627 = ssub.s32 %s626, 1
              loop: start=0, step=1, limit=1
              $region111: #{fused_forward.1} parent=109 // loop_pre_header
                _
              $region112: #{fused_forward.1} parent=109 // loop_header
                %s629 = sphi 0, %s633
                %p630 = scmp.ge.s32.totalorder %s629, 1
                %s634 = sphi %s614, %s614
                %s635 = sphi %s604, %s604
              $region113: #{fused_forward.1} parent=109 // loop_header_branch
                %632 = sbr.rel (%p630) target = $region117
              $region114: #{fused_forward.1} parent=109 // loop_body
                %v636 = vld [vmem:[%s634] sm:%s627]
                %637 = vst [vmem:[%s635] sm:%s627] %v636
                %v638 = vld [vmem:[%s634 + $0x38] sm:%s627]
                %639 = vst [vmem:[%s635 + $0x20] sm:%s627] %v638
                %v640 = vld [vmem:[%s634 + $0x70] sm:%s627]
                %641 = vst [vmem:[%s635 + $0x40] sm:%s627] %v640
                %v642 = vld [vmem:[%s634 + $0xa8] sm:%s627]
                %643 = vst [vmem:[%s635 + $0x60] sm:%s627] %v642
                %v644 = vld [vmem:[%s634 + $0xe0] sm:%s627]
                %645 = vst [vmem:[%s635 + $0x80] sm:%s627] %v644
                %v646 = vld [vmem:[%s634 + $0x118] sm:%s627]
                %647 = vst [vmem:[%s635 + $0xa0] sm:%s627] %v646
                %v648 = vld [vmem:[%s634 + $0x150] sm:%s627]
                %649 = vst [vmem:[%s635 + $0xc0] sm:%s627] %v648
                %v650 = vld [vmem:[%s634 + $0x188] sm:%s627]
                %651 = vst [vmem:[%s635 + $0xe0] sm:%s627] %v650
                %v652 = vld [vmem:[%s634 + $0x1c0] sm:%s627]
                %653 = vst [vmem:[%s635 + $0x100] sm:%s627] %v652
                %v654 = vld [vmem:[%s634 + $0x1f8] sm:%s627]
                %655 = vst [vmem:[%s635 + $0x120] sm:%s627] %v654
                %v656 = vld [vmem:[%s634 + $0x230] sm:%s627]
                %657 = vst [vmem:[%s635 + $0x140] sm:%s627] %v656
                %v658 = vld [vmem:[%s634 + $0x268] sm:%s627]
                %659 = vst [vmem:[%s635 + $0x160] sm:%s627] %v658
                %v660 = vld [vmem:[%s634 + $0x2a0] sm:%s627]
                %661 = vst [vmem:[%s635 + $0x180] sm:%s627] %v660
                %v662 = vld [vmem:[%s634 + $0x2d8] sm:%s627]
                %663 = vst [vmem:[%s635 + $0x1a0] sm:%s627] %v662
                %v664 = vld [vmem:[%s634 + $0x310] sm:%s627]
                %665 = vst [vmem:[%s635 + $0x1c0] sm:%s627] %v664
                %v666 = vld [vmem:[%s634 + $0x348] sm:%s627]
                %667 = vst [vmem:[%s635 + $0x1e0] sm:%s627] %v666
              $region115: #{fused_forward.1} parent=109 // loop_footer
                %s633 = sadd.s32 1, %s629
              $region116: #{fused_forward.1} parent=109 // loop_footer_branch
                %628 = sbr.rel target = $region112
              $region117: #{fused_forward.1} parent=109 // loop_exit
                _
            $region110: #{fused_forward.1} parent=101 // pred_fallthru
              _
          $region102: #{fused_forward.1} parent=97 // pred_fallthru
            _
          %997 = vnop
        $region98: #{fused_forward.1} parent=27 // pred_fallthru
          _
      $region28: #{fused_forward.1} parent=5 // pred_fallthru
        _
      %p998 = scmp.le.s32.totalorder 1, %s11
      %p999 = scmp.lt.s32.totalorder %s11, 3
      %p1000 = pnand %p998, %p999
      %p1001 = pneg %p1000
      // Predicated region
      $region161: #{fused_forward.1} parent=5 // pred_check
        _
      $region162: #{fused_forward.1} parent=5 // pred_check_branch
        %1003 = sbr.rel (%p1000) target = $region164
      $region163: #{fused_forward.1} parent=5 // pred_region
        %s1004 = ssub.s32 %s11, 1
        %s1005 = sand.u32 %s38, 1
        %s1006 = sand.u32 %s38, 1
        %s1007 = smul.addr %s1006, 512
        %s1008 = scalar_lea.vmem [#allocation2], %s1007
        // Predicated region
        $region165: #{fused_forward.1} parent=163 // pred_check
          %p1009 = pneg %p51
        $region166: #{fused_forward.1} parent=163 // pred_check_branch
          %1011 = sbr.rel (%p1009) target = $region168
        $region167: #{fused_forward.1} parent=163 // pred_region
          _
        $region168: #{fused_forward.1} parent=163 // pred_fallthru
          _
        %s1012 = sand.u32 %s66, 1
        %s1013 = sand.u32 %s66, 1
        %s1014 = smul.addr %s1013, 512
        %s1015 = scalar_lea.vmem [#allocation3], %s1014
        // Predicated region
        $region169: #{fused_forward.1} parent=163 // pred_check
          %p1016 = pneg %p79
        $region170: #{fused_forward.1} parent=163 // pred_check_branch
          %1018 = sbr.rel (%p1016) target = $region172
        $region171: #{fused_forward.1} parent=163 // pred_region
          _
        $region172: #{fused_forward.1} parent=163 // pred_fallthru
          _
        %s1019 = sand.u32 %s38, 1
        %s1020 = sand.u32 %s38, 1
        %s1021 = smul.addr %s1020, 512
        %s1022 = scalar_lea.vmem [#allocation2], %s1021
        %p1023 = pneg %p51
        %p1024 = pneg %p48
        %s1025 = sand.u32 %s66, 1
        %s1026 = sand.u32 %s66, 1
        %s1027 = smul.addr %s1026, 512
        %s1028 = scalar_lea.vmem [#allocation3], %s1027
        %p1029 = pneg %p79
        %p1030 = pneg %p76
        %p1031 = pneg %p100
        %p1032 = pneg %p97
        %p1033 = pneg %p121
        %p1034 = pneg %p118
        %p1035 = pneg %p142
        %p1036 = pneg %p139
        %p1037 = pneg %p170
        %p1038 = pneg %p167
        %s1039 = sand.u32 %s157, 1
        %s1040 = sand.u32 %s157, 1
        %s1041 = smul.addr %s1040, 512
        %s1042 = scalar_lea.vmem [#allocation4], %s1041
        %s1043 = smul.u32 4, %s21
        %s1044 = ssub.s32 7, %s1043
        %p1045 = scmp.lt.s32.totalorder %s1044, 4
        %s1046 = scalar_select %p1045, %s1044, 4
        %s1047 = smul.u32 128, %s1046
        %s1048 = smul.u32 4, %s21
        %s1049 = ssub.s32 7, %s1048
        %p1050 = scmp.lt.s32.totalorder %s1049, 4
        %s1051 = scalar_select %p1050, %s1049, 4
        %s1052 = smul.u32 128, %s1051
        %s1053 = smul.u32 4, %s21
        %s1054 = ssub.s32 7, %s1053
        %p1055 = scmp.lt.s32.totalorder %s1054, 4
        %s1056 = scalar_select %p1055, %s1054, 4
        %s1057 = smul.u32 128, %s1056
        %v1058 = vld [vmem:[%s2] sm:$0xff]
        %v1059 = vld [vmem:[%s2 + $0x8] sm:$0xff]
        %v1060 = vld [vmem:[%s2 + $0x10] sm:$0xff]
        %v1061 = vld [vmem:[%s2 + $0x18] sm:$0xff]
        %v1062 = vld [vmem:[%s2 + $0x20] sm:$0xff]
        %v1063 = vld [vmem:[%s2 + $0x28] sm:$0xff]
        %v1064 = vld [vmem:[%s2 + $0x30] sm:$0xff]
        %v1065 = vld [vmem:[%s2 + $0x38] sm:$0xff]
        %v1066 = vld [vmem:[%s2 + $0x40] sm:$0xff]
        %v1067 = vld [vmem:[%s2 + $0x48] sm:$0xff]
        %v1068 = vld [vmem:[%s2 + $0x50] sm:$0xff]
        %v1069 = vld [vmem:[%s2 + $0x58] sm:$0xff]
        %v1070 = vld [vmem:[%s2 + $0x60] sm:$0xff]
        %v1071 = vld [vmem:[%s2 + $0x68] sm:$0xff]
        %v1072 = vld [vmem:[%s2 + $0x70] sm:$0xff]
        %v1073 = vld [vmem:[%s2 + $0x78] sm:$0xff]
        %v1074 = vld [vmem:[%s1008] sm:$0xff]
        %v1075 = vld [vmem:[%s1008 + $0x8] sm:$0xff]
        %v1076 = vld [vmem:[%s1008 + $0x10] sm:$0xff]
        %v1077 = vld [vmem:[%s1008 + $0x18] sm:$0xff]
        %v1078 = vld [vmem:[%s1008 + $0x20] sm:$0xff]
        %v1079 = vld [vmem:[%s1008 + $0x28] sm:$0xff]
        %v1080 = vld [vmem:[%s1008 + $0x30] sm:$0xff]
        %v1081 = vld [vmem:[%s1008 + $0x38] sm:$0xff]
        %v1082 = vld [vmem:[%s1008 + $0x40] sm:$0xff]
        %v1083 = vld [vmem:[%s1008 + $0x48] sm:$0xff]
        %v1084 = vld [vmem:[%s1008 + $0x50] sm:$0xff]
        %v1085 = vld [vmem:[%s1008 + $0x58] sm:$0xff]
        %v1086 = vld [vmem:[%s1008 + $0x60] sm:$0xff]
        %v1087 = vld [vmem:[%s1008 + $0x68] sm:$0xff]
        %v1088 = vld [vmem:[%s1008 + $0x70] sm:$0xff]
        %v1089 = vld [vmem:[%s1008 + $0x78] sm:$0xff]
        %v1090 = vld [vmem:[%s1008 + $0x80] sm:$0xff]
        %v1091 = vld [vmem:[%s1008 + $0x88] sm:$0xff]
        %v1092 = vld [vmem:[%s1008 + $0x90] sm:$0xff]
        %v1093 = vld [vmem:[%s1008 + $0x98] sm:$0xff]
        %v1094 = vld [vmem:[%s1008 + $0xa0] sm:$0xff]
        %v1095 = vld [vmem:[%s1008 + $0xa8] sm:$0xff]
        %v1096 = vld [vmem:[%s1008 + $0xb0] sm:$0xff]
        %v1097 = vld [vmem:[%s1008 + $0xb8] sm:$0xff]
        %v1098 = vld [vmem:[%s1008 + $0xc0] sm:$0xff]
        %v1099 = vld [vmem:[%s1008 + $0xc8] sm:$0xff]
        %v1100 = vld [vmem:[%s1008 + $0xd0] sm:$0xff]
        %v1101 = vld [vmem:[%s1008 + $0xd8] sm:$0xff]
        %v1102 = vld [vmem:[%s1008 + $0xe0] sm:$0xff]
        %v1103 = vld [vmem:[%s1008 + $0xe8] sm:$0xff]
        %v1104 = vld [vmem:[%s1008 + $0xf0] sm:$0xff]
        %v1105 = vld [vmem:[%s1008 + $0xf8] sm:$0xff]
        %v1106 = vld [vmem:[%s1008 + $0x100] sm:$0xff]
        %v1107 = vld [vmem:[%s1008 + $0x108] sm:$0xff]
        %v1108 = vld [vmem:[%s1008 + $0x110] sm:$0xff]
        %v1109 = vld [vmem:[%s1008 + $0x118] sm:$0xff]
        %v1110 = vld [vmem:[%s1008 + $0x120] sm:$0xff]
        %v1111 = vld [vmem:[%s1008 + $0x128] sm:$0xff]
        %v1112 = vld [vmem:[%s1008 + $0x130] sm:$0xff]
        %v1113 = vld [vmem:[%s1008 + $0x138] sm:$0xff]
        %v1114 = vld [vmem:[%s1008 + $0x140] sm:$0xff]
        %v1115 = vld [vmem:[%s1008 + $0x148] sm:$0xff]
        %v1116 = vld [vmem:[%s1008 + $0x150] sm:$0xff]
        %v1117 = vld [vmem:[%s1008 + $0x158] sm:$0xff]
        %v1118 = vld [vmem:[%s1008 + $0x160] sm:$0xff]
        %v1119 = vld [vmem:[%s1008 + $0x168] sm:$0xff]
        %v1120 = vld [vmem:[%s1008 + $0x170] sm:$0xff]
        %v1121 = vld [vmem:[%s1008 + $0x178] sm:$0xff]
        %v1122 = vld [vmem:[%s1008 + $0x180] sm:$0xff]
        %v1123 = vld [vmem:[%s1008 + $0x188] sm:$0xff]
        %v1124 = vld [vmem:[%s1008 + $0x190] sm:$0xff]
        %v1125 = vld [vmem:[%s1008 + $0x198] sm:$0xff]
        %v1126 = vld [vmem:[%s1008 + $0x1a0] sm:$0xff]
        %v1127 = vld [vmem:[%s1008 + $0x1a8] sm:$0xff]
        %v1128 = vld [vmem:[%s1008 + $0x1b0] sm:$0xff]
        %v1129 = vld [vmem:[%s1008 + $0x1b8] sm:$0xff]
        %v1130 = vld [vmem:[%s1008 + $0x1c0] sm:$0xff]
        %v1131 = vld [vmem:[%s1008 + $0x1c8] sm:$0xff]
        %v1132 = vld [vmem:[%s1008 + $0x1d0] sm:$0xff]
        %v1133 = vld [vmem:[%s1008 + $0x1d8] sm:$0xff]
        %v1134 = vld [vmem:[%s1008 + $0x1e0] sm:$0xff]
        %v1135 = vld [vmem:[%s1008 + $0x1e8] sm:$0xff]
        %v1136 = vld [vmem:[%s1008 + $0x1f0] sm:$0xff]
        %v1137 = vld [vmem:[%s1008 + $0x1f8] sm:$0xff]
        %1138 = vmatpush.msra.mxu0 %v1134
        %1139 = vmatpush.msra.mxu0 %v1130
        %1140 = vmatpush.msra.mxu0 %v1126
        %1141 = vmatpush.msra.mxu0 %v1122
        %1142 = vmatpush.msra.mxu0 %v1118
        %1143 = vmatpush.msra.mxu0 %v1114
        %1144 = vmatpush.msra.mxu0 %v1110
        %1145 = vmatpush.msra.mxu0 %v1106
        %1146 = vmatpush.msra.mxu0 %v1102
        %1147 = vmatpush.msra.mxu0 %v1098
        %1148 = vmatpush.msra.mxu0 %v1094
        %1149 = vmatpush.msra.mxu0 %v1090
        %1150 = vmatpush.msra.mxu0 %v1086
        %1151 = vmatpush.msra.mxu0 %v1082
        %1152 = vmatpush.msra.mxu0 %v1078
        %1153 = vmatpush.msra.mxu0 %v1074
        %1154 = vmatmul.f32.gmra.mxu0 %v1058
        %v1155 = vpop.f32.mrf.mxu0
        %v1156 = vadd.f32 0.0, %v1155
        %1157 = vmatmul.f32.gmra.mxu0 %v1059
        %v1158 = vpop.f32.mrf.mxu0
        %v1159 = vadd.f32 0.0, %v1158
        %1160 = vmatmul.f32.gmra.mxu0 %v1060
        %v1161 = vpop.f32.mrf.mxu0
        %v1162 = vadd.f32 0.0, %v1161
        %1163 = vmatmul.f32.gmra.mxu0 %v1061
        %v1164 = vpop.f32.mrf.mxu0
        %v1165 = vadd.f32 0.0, %v1164
        %1166 = vmatmul.f32.gmra.mxu0 %v1062
        %v1167 = vpop.f32.mrf.mxu0
        %v1168 = vadd.f32 0.0, %v1167
        %1169 = vmatmul.f32.gmra.mxu0 %v1063
        %v1170 = vpop.f32.mrf.mxu0
        %v1171 = vadd.f32 0.0, %v1170
        %1172 = vmatmul.f32.gmra.mxu0 %v1064
        %v1173 = vpop.f32.mrf.mxu0
        %v1174 = vadd.f32 0.0, %v1173
        %1175 = vmatmul.f32.gmra.mxu0 %v1065
        %v1176 = vpop.f32.mrf.mxu0
        %v1177 = vadd.f32 0.0, %v1176
        %1178 = vmatmul.f32.gmra.mxu0 %v1066
        %v1179 = vpop.f32.mrf.mxu0
        %v1180 = vadd.f32 0.0, %v1179
        %1181 = vmatmul.f32.gmra.mxu0 %v1067
        %v1182 = vpop.f32.mrf.mxu0
        %v1183 = vadd.f32 0.0, %v1182
        %1184 = vmatmul.f32.gmra.mxu0 %v1068
        %v1185 = vpop.f32.mrf.mxu0
        %v1186 = vadd.f32 0.0, %v1185
        %1187 = vmatmul.f32.gmra.mxu0 %v1069
        %v1188 = vpop.f32.mrf.mxu0
        %v1189 = vadd.f32 0.0, %v1188
        %1190 = vmatmul.f32.gmra.mxu0 %v1070
        %v1191 = vpop.f32.mrf.mxu0
        %v1192 = vadd.f32 0.0, %v1191
        %1193 = vmatmul.f32.gmra.mxu0 %v1071
        %v1194 = vpop.f32.mrf.mxu0
        %v1195 = vadd.f32 0.0, %v1194
        %1196 = vmatmul.f32.gmra.mxu0 %v1072
        %v1197 = vpop.f32.mrf.mxu0
        %v1198 = vadd.f32 0.0, %v1197
        %1199 = vmatmul.f32.gmra.mxu0 %v1073
        %v1200 = vpop.f32.mrf.mxu0
        %v1201 = vadd.f32 0.0, %v1200
        %1202 = vdwg.mxu0
        %1203 = vmatpush.msra.mxu0 %v1135
        %1204 = vmatpush.msra.mxu0 %v1131
        %1205 = vmatpush.msra.mxu0 %v1127
        %1206 = vmatpush.msra.mxu0 %v1123
        %1207 = vmatpush.msra.mxu0 %v1119
        %1208 = vmatpush.msra.mxu0 %v1115
        %1209 = vmatpush.msra.mxu0 %v1111
        %1210 = vmatpush.msra.mxu0 %v1107
        %1211 = vmatpush.msra.mxu0 %v1103
        %1212 = vmatpush.msra.mxu0 %v1099
        %1213 = vmatpush.msra.mxu0 %v1095
        %1214 = vmatpush.msra.mxu0 %v1091
        %1215 = vmatpush.msra.mxu0 %v1087
        %1216 = vmatpush.msra.mxu0 %v1083
        %1217 = vmatpush.msra.mxu0 %v1079
        %1218 = vmatpush.msra.mxu0 %v1075
        %1219 = vmatmul.f32.gmra.mxu0 %v1058
        %v1220 = vpop.f32.mrf.mxu0
        %v1221 = vadd.f32 0.0, %v1220
        %1222 = vmatmul.f32.gmra.mxu0 %v1059
        %v1223 = vpop.f32.mrf.mxu0
        %v1224 = vadd.f32 0.0, %v1223
        %1225 = vmatmul.f32.gmra.mxu0 %v1060
        %v1226 = vpop.f32.mrf.mxu0
        %v1227 = vadd.f32 0.0, %v1226
        %1228 = vmatmul.f32.gmra.mxu0 %v1061
        %v1229 = vpop.f32.mrf.mxu0
        %v1230 = vadd.f32 0.0, %v1229
        %1231 = vmatmul.f32.gmra.mxu0 %v1062
        %v1232 = vpop.f32.mrf.mxu0
        %v1233 = vadd.f32 0.0, %v1232
        %1234 = vmatmul.f32.gmra.mxu0 %v1063
        %v1235 = vpop.f32.mrf.mxu0
        %v1236 = vadd.f32 0.0, %v1235
        %1237 = vmatmul.f32.gmra.mxu0 %v1064
        %v1238 = vpop.f32.mrf.mxu0
        %v1239 = vadd.f32 0.0, %v1238
        %1240 = vmatmul.f32.gmra.mxu0 %v1065
        %v1241 = vpop.f32.mrf.mxu0
        %v1242 = vadd.f32 0.0, %v1241
        %1243 = vmatmul.f32.gmra.mxu0 %v1066
        %v1244 = vpop.f32.mrf.mxu0
        %v1245 = vadd.f32 0.0, %v1244
        %1246 = vmatmul.f32.gmra.mxu0 %v1067
        %v1247 = vpop.f32.mrf.mxu0
        %v1248 = vadd.f32 0.0, %v1247
        %1249 = vmatmul.f32.gmra.mxu0 %v1068
        %v1250 = vpop.f32.mrf.mxu0
        %v1251 = vadd.f32 0.0, %v1250
        %1252 = vmatmul.f32.gmra.mxu0 %v1069
        %v1253 = vpop.f32.mrf.mxu0
        %v1254 = vadd.f32 0.0, %v1253
        %1255 = vmatmul.f32.gmra.mxu0 %v1070
        %v1256 = vpop.f32.mrf.mxu0
        %v1257 = vadd.f32 0.0, %v1256
        %1258 = vmatmul.f32.gmra.mxu0 %v1071
        %v1259 = vpop.f32.mrf.mxu0
        %v1260 = vadd.f32 0.0, %v1259
        %1261 = vmatmul.f32.gmra.mxu0 %v1072
        %v1262 = vpop.f32.mrf.mxu0
        %v1263 = vadd.f32 0.0, %v1262
        %1264 = vmatmul.f32.gmra.mxu0 %v1073
        %v1265 = vpop.f32.mrf.mxu0
        %v1266 = vadd.f32 0.0, %v1265
        %1267 = vdwg.mxu0
        %1268 = vmatpush.msra.mxu0 %v1136
        %1269 = vmatpush.msra.mxu0 %v1132
        %1270 = vmatpush.msra.mxu0 %v1128
        %1271 = vmatpush.msra.mxu0 %v1124
        %1272 = vmatpush.msra.mxu0 %v1120
        %1273 = vmatpush.msra.mxu0 %v1116
        %1274 = vmatpush.msra.mxu0 %v1112
        %1275 = vmatpush.msra.mxu0 %v1108
        %1276 = vmatpush.msra.mxu0 %v1104
        %1277 = vmatpush.msra.mxu0 %v1100
        %1278 = vmatpush.msra.mxu0 %v1096
        %1279 = vmatpush.msra.mxu0 %v1092
        %1280 = vmatpush.msra.mxu0 %v1088
        %1281 = vmatpush.msra.mxu0 %v1084
        %1282 = vmatpush.msra.mxu0 %v1080
        %1283 = vmatpush.msra.mxu0 %v1076
        %1284 = vmatmul.f32.gmra.mxu0 %v1058
        %v1285 = vpop.f32.mrf.mxu0
        %v1286 = vadd.f32 0.0, %v1285
        %1287 = vmatmul.f32.gmra.mxu0 %v1059
        %v1288 = vpop.f32.mrf.mxu0
        %v1289 = vadd.f32 0.0, %v1288
        %1290 = vmatmul.f32.gmra.mxu0 %v1060
        %v1291 = vpop.f32.mrf.mxu0
        %v1292 = vadd.f32 0.0, %v1291
        %1293 = vmatmul.f32.gmra.mxu0 %v1061
        %v1294 = vpop.f32.mrf.mxu0
        %v1295 = vadd.f32 0.0, %v1294
        %1296 = vmatmul.f32.gmra.mxu0 %v1062
        %v1297 = vpop.f32.mrf.mxu0
        %v1298 = vadd.f32 0.0, %v1297
        %1299 = vmatmul.f32.gmra.mxu0 %v1063
        %v1300 = vpop.f32.mrf.mxu0
        %v1301 = vadd.f32 0.0, %v1300
        %1302 = vmatmul.f32.gmra.mxu0 %v1064
        %v1303 = vpop.f32.mrf.mxu0
        %v1304 = vadd.f32 0.0, %v1303
        %1305 = vmatmul.f32.gmra.mxu0 %v1065
        %v1306 = vpop.f32.mrf.mxu0
        %v1307 = vadd.f32 0.0, %v1306
        %1308 = vmatmul.f32.gmra.mxu0 %v1066
        %v1309 = vpop.f32.mrf.mxu0
        %v1310 = vadd.f32 0.0, %v1309
        %1311 = vmatmul.f32.gmra.mxu0 %v1067
        %v1312 = vpop.f32.mrf.mxu0
        %v1313 = vadd.f32 0.0, %v1312
        %1314 = vmatmul.f32.gmra.mxu0 %v1068
        %v1315 = vpop.f32.mrf.mxu0
        %v1316 = vadd.f32 0.0, %v1315
        %1317 = vmatmul.f32.gmra.mxu0 %v1069
        %v1318 = vpop.f32.mrf.mxu0
        %v1319 = vadd.f32 0.0, %v1318
        %1320 = vmatmul.f32.gmra.mxu0 %v1070
        %v1321 = vpop.f32.mrf.mxu0
        %v1322 = vadd.f32 0.0, %v1321
        %1323 = vmatmul.f32.gmra.mxu0 %v1071
        %v1324 = vpop.f32.mrf.mxu0
        %v1325 = vadd.f32 0.0, %v1324
        %1326 = vmatmul.f32.gmra.mxu0 %v1072
        %v1327 = vpop.f32.mrf.mxu0
        %v1328 = vadd.f32 0.0, %v1327
        %1329 = vmatmul.f32.gmra.mxu0 %v1073
        %v1330 = vpop.f32.mrf.mxu0
        %v1331 = vadd.f32 0.0, %v1330
        %1332 = vdwg.mxu0
        %1333 = vmatpush.msra.mxu0 %v1137
        %1334 = vmatpush.msra.mxu0 %v1133
        %1335 = vmatpush.msra.mxu0 %v1129
        %1336 = vmatpush.msra.mxu0 %v1125
        %1337 = vmatpush.msra.mxu0 %v1121
        %1338 = vmatpush.msra.mxu0 %v1117
        %1339 = vmatpush.msra.mxu0 %v1113
        %1340 = vmatpush.msra.mxu0 %v1109
        %1341 = vmatpush.msra.mxu0 %v1105
        %1342 = vmatpush.msra.mxu0 %v1101
        %1343 = vmatpush.msra.mxu0 %v1097
        %1344 = vmatpush.msra.mxu0 %v1093
        %1345 = vmatpush.msra.mxu0 %v1089
        %1346 = vmatpush.msra.mxu0 %v1085
        %1347 = vmatpush.msra.mxu0 %v1081
        %1348 = vmatpush.msra.mxu0 %v1077
        %1349 = vmatmul.f32.gmra.mxu0 %v1058
        %v1350 = vpop.f32.mrf.mxu0
        %v1351 = vadd.f32 0.0, %v1350
        %1352 = vmatmul.f32.gmra.mxu0 %v1059
        %v1353 = vpop.f32.mrf.mxu0
        %v1354 = vadd.f32 0.0, %v1353
        %1355 = vmatmul.f32.gmra.mxu0 %v1060
        %v1356 = vpop.f32.mrf.mxu0
        %v1357 = vadd.f32 0.0, %v1356
        %1358 = vmatmul.f32.gmra.mxu0 %v1061
        %v1359 = vpop.f32.mrf.mxu0
        %v1360 = vadd.f32 0.0, %v1359
        %1361 = vmatmul.f32.gmra.mxu0 %v1062
        %v1362 = vpop.f32.mrf.mxu0
        %v1363 = vadd.f32 0.0, %v1362
        %1364 = vmatmul.f32.gmra.mxu0 %v1063
        %v1365 = vpop.f32.mrf.mxu0
        %v1366 = vadd.f32 0.0, %v1365
        %1367 = vmatmul.f32.gmra.mxu0 %v1064
        %v1368 = vpop.f32.mrf.mxu0
        %v1369 = vadd.f32 0.0, %v1368
        %1370 = vmatmul.f32.gmra.mxu0 %v1065
        %v1371 = vpop.f32.mrf.mxu0
        %v1372 = vadd.f32 0.0, %v1371
        %1373 = vmatmul.f32.gmra.mxu0 %v1066
        %v1374 = vpop.f32.mrf.mxu0
        %v1375 = vadd.f32 0.0, %v1374
        %1376 = vmatmul.f32.gmra.mxu0 %v1067
        %v1377 = vpop.f32.mrf.mxu0
        %v1378 = vadd.f32 0.0, %v1377
        %1379 = vmatmul.f32.gmra.mxu0 %v1068
        %v1380 = vpop.f32.mrf.mxu0
        %v1381 = vadd.f32 0.0, %v1380
        %1382 = vmatmul.f32.gmra.mxu0 %v1069
        %v1383 = vpop.f32.mrf.mxu0
        %v1384 = vadd.f32 0.0, %v1383
        %1385 = vmatmul.f32.gmra.mxu0 %v1070
        %v1386 = vpop.f32.mrf.mxu0
        %v1387 = vadd.f32 0.0, %v1386
        %1388 = vmatmul.f32.gmra.mxu0 %v1071
        %v1389 = vpop.f32.mrf.mxu0
        %v1390 = vadd.f32 0.0, %v1389
        %1391 = vmatmul.f32.gmra.mxu0 %v1072
        %v1392 = vpop.f32.mrf.mxu0
        %v1393 = vadd.f32 0.0, %v1392
        %1394 = vmatmul.f32.gmra.mxu0 %v1073
        %v1395 = vpop.f32.mrf.mxu0
        %v1396 = vadd.f32 0.0, %v1395
        %1397 = vdwg.mxu0
        %v1398 = vld [vmem:[%s1015] sm:$0xff]
        %v1399 = vld [vmem:[%s1015 + $0x8] sm:$0xff]
        %v1400 = vld [vmem:[%s1015 + $0x10] sm:$0xff]
        %v1401 = vld [vmem:[%s1015 + $0x18] sm:$0xff]
        %v1402 = vld [vmem:[%s1015 + $0x20] sm:$0xff]
        %v1403 = vld [vmem:[%s1015 + $0x28] sm:$0xff]
        %v1404 = vld [vmem:[%s1015 + $0x30] sm:$0xff]
        %v1405 = vld [vmem:[%s1015 + $0x38] sm:$0xff]
        %v1406 = vld [vmem:[%s1015 + $0x40] sm:$0xff]
        %v1407 = vld [vmem:[%s1015 + $0x48] sm:$0xff]
        %v1408 = vld [vmem:[%s1015 + $0x50] sm:$0xff]
        %v1409 = vld [vmem:[%s1015 + $0x58] sm:$0xff]
        %v1410 = vld [vmem:[%s1015 + $0x60] sm:$0xff]
        %v1411 = vld [vmem:[%s1015 + $0x68] sm:$0xff]
        %v1412 = vld [vmem:[%s1015 + $0x70] sm:$0xff]
        %v1413 = vld [vmem:[%s1015 + $0x78] sm:$0xff]
        %v1414 = vld [vmem:[%s1015 + $0x80] sm:$0xff]
        %v1415 = vld [vmem:[%s1015 + $0x88] sm:$0xff]
        %v1416 = vld [vmem:[%s1015 + $0x90] sm:$0xff]
        %v1417 = vld [vmem:[%s1015 + $0x98] sm:$0xff]
        %v1418 = vld [vmem:[%s1015 + $0xa0] sm:$0xff]
        %v1419 = vld [vmem:[%s1015 + $0xa8] sm:$0xff]
        %v1420 = vld [vmem:[%s1015 + $0xb0] sm:$0xff]
        %v1421 = vld [vmem:[%s1015 + $0xb8] sm:$0xff]
        %v1422 = vld [vmem:[%s1015 + $0xc0] sm:$0xff]
        %v1423 = vld [vmem:[%s1015 + $0xc8] sm:$0xff]
        %v1424 = vld [vmem:[%s1015 + $0xd0] sm:$0xff]
        %v1425 = vld [vmem:[%s1015 + $0xd8] sm:$0xff]
        %v1426 = vld [vmem:[%s1015 + $0xe0] sm:$0xff]
        %v1427 = vld [vmem:[%s1015 + $0xe8] sm:$0xff]
        %v1428 = vld [vmem:[%s1015 + $0xf0] sm:$0xff]
        %v1429 = vld [vmem:[%s1015 + $0xf8] sm:$0xff]
        %v1430 = vld [vmem:[%s1015 + $0x100] sm:$0xff]
        %v1431 = vld [vmem:[%s1015 + $0x108] sm:$0xff]
        %v1432 = vld [vmem:[%s1015 + $0x110] sm:$0xff]
        %v1433 = vld [vmem:[%s1015 + $0x118] sm:$0xff]
        %v1434 = vld [vmem:[%s1015 + $0x120] sm:$0xff]
        %v1435 = vld [vmem:[%s1015 + $0x128] sm:$0xff]
        %v1436 = vld [vmem:[%s1015 + $0x130] sm:$0xff]
        %v1437 = vld [vmem:[%s1015 + $0x138] sm:$0xff]
        %v1438 = vld [vmem:[%s1015 + $0x140] sm:$0xff]
        %v1439 = vld [vmem:[%s1015 + $0x148] sm:$0xff]
        %v1440 = vld [vmem:[%s1015 + $0x150] sm:$0xff]
        %v1441 = vld [vmem:[%s1015 + $0x158] sm:$0xff]
        %v1442 = vld [vmem:[%s1015 + $0x160] sm:$0xff]
        %v1443 = vld [vmem:[%s1015 + $0x168] sm:$0xff]
        %v1444 = vld [vmem:[%s1015 + $0x170] sm:$0xff]
        %v1445 = vld [vmem:[%s1015 + $0x178] sm:$0xff]
        %v1446 = vld [vmem:[%s1015 + $0x180] sm:$0xff]
        %v1447 = vld [vmem:[%s1015 + $0x188] sm:$0xff]
        %v1448 = vld [vmem:[%s1015 + $0x190] sm:$0xff]
        %v1449 = vld [vmem:[%s1015 + $0x198] sm:$0xff]
        %v1450 = vld [vmem:[%s1015 + $0x1a0] sm:$0xff]
        %v1451 = vld [vmem:[%s1015 + $0x1a8] sm:$0xff]
        %v1452 = vld [vmem:[%s1015 + $0x1b0] sm:$0xff]
        %v1453 = vld [vmem:[%s1015 + $0x1b8] sm:$0xff]
        %v1454 = vld [vmem:[%s1015 + $0x1c0] sm:$0xff]
        %v1455 = vld [vmem:[%s1015 + $0x1c8] sm:$0xff]
        %v1456 = vld [vmem:[%s1015 + $0x1d0] sm:$0xff]
        %v1457 = vld [vmem:[%s1015 + $0x1d8] sm:$0xff]
        %v1458 = vld [vmem:[%s1015 + $0x1e0] sm:$0xff]
        %v1459 = vld [vmem:[%s1015 + $0x1e8] sm:$0xff]
        %v1460 = vld [vmem:[%s1015 + $0x1f0] sm:$0xff]
        %v1461 = vld [vmem:[%s1015 + $0x1f8] sm:$0xff]
        %v1462 = vadd.f32 %v1398, %v1156
        %v1463 = vadd.f32 %v1399, %v1221
        %v1464 = vadd.f32 %v1400, %v1286
        %v1465 = vadd.f32 %v1401, %v1351
        %v1466 = vadd.f32 %v1402, %v1159
        %v1467 = vadd.f32 %v1403, %v1224
        %v1468 = vadd.f32 %v1404, %v1289
        %v1469 = vadd.f32 %v1405, %v1354
        %v1470 = vadd.f32 %v1406, %v1162
        %v1471 = vadd.f32 %v1407, %v1227
        %v1472 = vadd.f32 %v1408, %v1292
        %v1473 = vadd.f32 %v1409, %v1357
        %v1474 = vadd.f32 %v1410, %v1165
        %v1475 = vadd.f32 %v1411, %v1230
        %v1476 = vadd.f32 %v1412, %v1295
        %v1477 = vadd.f32 %v1413, %v1360
        %v1478 = vadd.f32 %v1414, %v1168
        %v1479 = vadd.f32 %v1415, %v1233
        %v1480 = vadd.f32 %v1416, %v1298
        %v1481 = vadd.f32 %v1417, %v1363
        %v1482 = vadd.f32 %v1418, %v1171
        %v1483 = vadd.f32 %v1419, %v1236
        %v1484 = vadd.f32 %v1420, %v1301
        %v1485 = vadd.f32 %v1421, %v1366
        %v1486 = vadd.f32 %v1422, %v1174
        %v1487 = vadd.f32 %v1423, %v1239
        %v1488 = vadd.f32 %v1424, %v1304
        %v1489 = vadd.f32 %v1425, %v1369
        %v1490 = vadd.f32 %v1426, %v1177
        %v1491 = vadd.f32 %v1427, %v1242
        %v1492 = vadd.f32 %v1428, %v1307
        %v1493 = vadd.f32 %v1429, %v1372
        %v1494 = vadd.f32 %v1430, %v1180
        %v1495 = vadd.f32 %v1431, %v1245
        %v1496 = vadd.f32 %v1432, %v1310
        %v1497 = vadd.f32 %v1433, %v1375
        %v1498 = vadd.f32 %v1434, %v1183
        %v1499 = vadd.f32 %v1435, %v1248
        %v1500 = vadd.f32 %v1436, %v1313
        %v1501 = vadd.f32 %v1437, %v1378
        %v1502 = vadd.f32 %v1438, %v1186
        %v1503 = vadd.f32 %v1439, %v1251
        %v1504 = vadd.f32 %v1440, %v1316
        %v1505 = vadd.f32 %v1441, %v1381
        %v1506 = vadd.f32 %v1442, %v1189
        %v1507 = vadd.f32 %v1443, %v1254
        %v1508 = vadd.f32 %v1444, %v1319
        %v1509 = vadd.f32 %v1445, %v1384
        %v1510 = vadd.f32 %v1446, %v1192
        %v1511 = vadd.f32 %v1447, %v1257
        %v1512 = vadd.f32 %v1448, %v1322
        %v1513 = vadd.f32 %v1449, %v1387
        %v1514 = vadd.f32 %v1450, %v1195
        %v1515 = vadd.f32 %v1451, %v1260
        %v1516 = vadd.f32 %v1452, %v1325
        %v1517 = vadd.f32 %v1453, %v1390
        %v1518 = vadd.f32 %v1454, %v1198
        %v1519 = vadd.f32 %v1455, %v1263
        %v1520 = vadd.f32 %v1456, %v1328
        %v1521 = vadd.f32 %v1457, %v1393
        %v1522 = vadd.f32 %v1458, %v1201
        %v1523 = vadd.f32 %v1459, %v1266
        %v1524 = vadd.f32 %v1460, %v1331
        %v1525 = vadd.f32 %v1461, %v1396
        %v1526 = vld [vmem:[%s3] sm:$0xff]
        %v1527 = vld [vmem:[%s3 + $0x8] sm:$0xff]
        %v1528 = vld [vmem:[%s3 + $0x10] sm:$0xff]
        %v1529 = vld [vmem:[%s3 + $0x18] sm:$0xff]
        %v1530 = vld [vmem:[%s3 + $0x20] sm:$0xff]
        %v1531 = vld [vmem:[%s3 + $0x28] sm:$0xff]
        %v1532 = vld [vmem:[%s3 + $0x30] sm:$0xff]
        %v1533 = vld [vmem:[%s3 + $0x38] sm:$0xff]
        %v1534 = vld [vmem:[%s3 + $0x40] sm:$0xff]
        %v1535 = vld [vmem:[%s3 + $0x48] sm:$0xff]
        %v1536 = vld [vmem:[%s3 + $0x50] sm:$0xff]
        %v1537 = vld [vmem:[%s3 + $0x58] sm:$0xff]
        %v1538 = vld [vmem:[%s3 + $0x60] sm:$0xff]
        %v1539 = vld [vmem:[%s3 + $0x68] sm:$0xff]
        %v1540 = vld [vmem:[%s3 + $0x70] sm:$0xff]
        %v1541 = vld [vmem:[%s3 + $0x78] sm:$0xff]
        %1543 = vset.pattern.permute.xlu0 0
        %1544 = vperm.xlu0 %1543, %v1526
        %v1545 = vpop.permute.xlu0 %1544
        %1548 = vset.pattern.permute.xlu0 0
        %1549 = vperm.xlu0 %1548, %v1527
        %v1550 = vpop.permute.xlu0 %1549
        %1553 = vset.pattern.permute.xlu0 0
        %1554 = vperm.xlu0 %1553, %v1528
        %v1555 = vpop.permute.xlu0 %1554
        %1558 = vset.pattern.permute.xlu0 0
        %1559 = vperm.xlu0 %1558, %v1529
        %v1560 = vpop.permute.xlu0 %1559
        %1563 = vset.pattern.permute.xlu0 0
        %1564 = vperm.xlu0 %1563, %v1530
        %v1565 = vpop.permute.xlu0 %1564
        %1568 = vset.pattern.permute.xlu0 0
        %1569 = vperm.xlu0 %1568, %v1531
        %v1570 = vpop.permute.xlu0 %1569
        %1573 = vset.pattern.permute.xlu0 0
        %1574 = vperm.xlu0 %1573, %v1532
        %v1575 = vpop.permute.xlu0 %1574
        %1578 = vset.pattern.permute.xlu0 0
        %1579 = vperm.xlu0 %1578, %v1533
        %v1580 = vpop.permute.xlu0 %1579
        %1583 = vset.pattern.permute.xlu0 0
        %1584 = vperm.xlu0 %1583, %v1534
        %v1585 = vpop.permute.xlu0 %1584
        %1588 = vset.pattern.permute.xlu0 0
        %1589 = vperm.xlu0 %1588, %v1535
        %v1590 = vpop.permute.xlu0 %1589
        %1593 = vset.pattern.permute.xlu0 0
        %1594 = vperm.xlu0 %1593, %v1536
        %v1595 = vpop.permute.xlu0 %1594
        %1598 = vset.pattern.permute.xlu0 0
        %1599 = vperm.xlu0 %1598, %v1537
        %v1600 = vpop.permute.xlu0 %1599
        %1603 = vset.pattern.permute.xlu0 0
        %1604 = vperm.xlu0 %1603, %v1538
        %v1605 = vpop.permute.xlu0 %1604
        %1608 = vset.pattern.permute.xlu0 0
        %1609 = vperm.xlu0 %1608, %v1539
        %v1610 = vpop.permute.xlu0 %1609
        %1613 = vset.pattern.permute.xlu0 0
        %1614 = vperm.xlu0 %1613, %v1540
        %v1615 = vpop.permute.xlu0 %1614
        %1618 = vset.pattern.permute.xlu0 0
        %1619 = vperm.xlu0 %1618, %v1541
        %v1620 = vpop.permute.xlu0 %1619
        %v1622 = vadd.f32 %v1462, %v1545
        %v1623 = vadd.f32 %v1463, %v1545
        %v1624 = vadd.f32 %v1464, %v1545
        %v1625 = vadd.f32 %v1465, %v1545
        %v1626 = vadd.f32 %v1466, %v1550
        %v1627 = vadd.f32 %v1467, %v1550
        %v1628 = vadd.f32 %v1468, %v1550
        %v1629 = vadd.f32 %v1469, %v1550
        %v1630 = vadd.f32 %v1470, %v1555
        %v1631 = vadd.f32 %v1471, %v1555
        %v1632 = vadd.f32 %v1472, %v1555
        %v1633 = vadd.f32 %v1473, %v1555
        %v1634 = vadd.f32 %v1474, %v1560
        %v1635 = vadd.f32 %v1475, %v1560
        %v1636 = vadd.f32 %v1476, %v1560
        %v1637 = vadd.f32 %v1477, %v1560
        %v1638 = vadd.f32 %v1478, %v1565
        %v1639 = vadd.f32 %v1479, %v1565
        %v1640 = vadd.f32 %v1480, %v1565
        %v1641 = vadd.f32 %v1481, %v1565
        %v1642 = vadd.f32 %v1482, %v1570
        %v1643 = vadd.f32 %v1483, %v1570
        %v1644 = vadd.f32 %v1484, %v1570
        %v1645 = vadd.f32 %v1485, %v1570
        %v1646 = vadd.f32 %v1486, %v1575
        %v1647 = vadd.f32 %v1487, %v1575
        %v1648 = vadd.f32 %v1488, %v1575
        %v1649 = vadd.f32 %v1489, %v1575
        %v1650 = vadd.f32 %v1490, %v1580
        %v1651 = vadd.f32 %v1491, %v1580
        %v1652 = vadd.f32 %v1492, %v1580
        %v1653 = vadd.f32 %v1493, %v1580
        %v1654 = vadd.f32 %v1494, %v1585
        %v1655 = vadd.f32 %v1495, %v1585
        %v1656 = vadd.f32 %v1496, %v1585
        %v1657 = vadd.f32 %v1497, %v1585
        %v1658 = vadd.f32 %v1498, %v1590
        %v1659 = vadd.f32 %v1499, %v1590
        %v1660 = vadd.f32 %v1500, %v1590
        %v1661 = vadd.f32 %v1501, %v1590
        %v1662 = vadd.f32 %v1502, %v1595
        %v1663 = vadd.f32 %v1503, %v1595
        %v1664 = vadd.f32 %v1504, %v1595
        %v1665 = vadd.f32 %v1505, %v1595
        %v1666 = vadd.f32 %v1506, %v1600
        %v1667 = vadd.f32 %v1507, %v1600
        %v1668 = vadd.f32 %v1508, %v1600
        %v1669 = vadd.f32 %v1509, %v1600
        %v1670 = vadd.f32 %v1510, %v1605
        %v1671 = vadd.f32 %v1511, %v1605
        %v1672 = vadd.f32 %v1512, %v1605
        %v1673 = vadd.f32 %v1513, %v1605
        %v1674 = vadd.f32 %v1514, %v1610
        %v1675 = vadd.f32 %v1515, %v1610
        %v1676 = vadd.f32 %v1516, %v1610
        %v1677 = vadd.f32 %v1517, %v1610
        %v1678 = vadd.f32 %v1518, %v1615
        %v1679 = vadd.f32 %v1519, %v1615
        %v1680 = vadd.f32 %v1520, %v1615
        %v1681 = vadd.f32 %v1521, %v1615
        %v1682 = vadd.f32 %v1522, %v1620
        %v1683 = vadd.f32 %v1523, %v1620
        %v1684 = vadd.f32 %v1524, %v1620
        %v1685 = vadd.f32 %v1525, %v1620
        %v1686 = vmax.f32 %v1622, 0.0
        %v1687 = vmax.f32 %v1623, 0.0
        %v1688 = vmax.f32 %v1624, 0.0
        %v1689 = vmax.f32 %v1625, 0.0
        %v1690 = vmax.f32 %v1626, 0.0
        %v1691 = vmax.f32 %v1627, 0.0
        %v1692 = vmax.f32 %v1628, 0.0
        %v1693 = vmax.f32 %v1629, 0.0
        %v1694 = vmax.f32 %v1630, 0.0
        %v1695 = vmax.f32 %v1631, 0.0
        %v1696 = vmax.f32 %v1632, 0.0
        %v1697 = vmax.f32 %v1633, 0.0
        %v1698 = vmax.f32 %v1634, 0.0
        %v1699 = vmax.f32 %v1635, 0.0
        %v1700 = vmax.f32 %v1636, 0.0
        %v1701 = vmax.f32 %v1637, 0.0
        %v1702 = vmax.f32 %v1638, 0.0
        %v1703 = vmax.f32 %v1639, 0.0
        %v1704 = vmax.f32 %v1640, 0.0
        %v1705 = vmax.f32 %v1641, 0.0
        %v1706 = vmax.f32 %v1642, 0.0
        %v1707 = vmax.f32 %v1643, 0.0
        %v1708 = vmax.f32 %v1644, 0.0
        %v1709 = vmax.f32 %v1645, 0.0
        %v1710 = vmax.f32 %v1646, 0.0
        %v1711 = vmax.f32 %v1647, 0.0
        %v1712 = vmax.f32 %v1648, 0.0
        %v1713 = vmax.f32 %v1649, 0.0
        %v1714 = vmax.f32 %v1650, 0.0
        %v1715 = vmax.f32 %v1651, 0.0
        %v1716 = vmax.f32 %v1652, 0.0
        %v1717 = vmax.f32 %v1653, 0.0
        %v1718 = vmax.f32 %v1654, 0.0
        %v1719 = vmax.f32 %v1655, 0.0
        %v1720 = vmax.f32 %v1656, 0.0
        %v1721 = vmax.f32 %v1657, 0.0
        %v1722 = vmax.f32 %v1658, 0.0
        %v1723 = vmax.f32 %v1659, 0.0
        %v1724 = vmax.f32 %v1660, 0.0
        %v1725 = vmax.f32 %v1661, 0.0
        %v1726 = vmax.f32 %v1662, 0.0
        %v1727 = vmax.f32 %v1663, 0.0
        %v1728 = vmax.f32 %v1664, 0.0
        %v1729 = vmax.f32 %v1665, 0.0
        %v1730 = vmax.f32 %v1666, 0.0
        %v1731 = vmax.f32 %v1667, 0.0
        %v1732 = vmax.f32 %v1668, 0.0
        %v1733 = vmax.f32 %v1669, 0.0
        %v1734 = vmax.f32 %v1670, 0.0
        %v1735 = vmax.f32 %v1671, 0.0
        %v1736 = vmax.f32 %v1672, 0.0
        %v1737 = vmax.f32 %v1673, 0.0
        %v1738 = vmax.f32 %v1674, 0.0
        %v1739 = vmax.f32 %v1675, 0.0
        %v1740 = vmax.f32 %v1676, 0.0
        %v1741 = vmax.f32 %v1677, 0.0
        %v1742 = vmax.f32 %v1678, 0.0
        %v1743 = vmax.f32 %v1679, 0.0
        %v1744 = vmax.f32 %v1680, 0.0
        %v1745 = vmax.f32 %v1681, 0.0
        %v1746 = vmax.f32 %v1682, 0.0
        %v1747 = vmax.f32 %v1683, 0.0
        %v1748 = vmax.f32 %v1684, 0.0
        %v1749 = vmax.f32 %v1685, 0.0
        %v1750 = vld [vmem:[%s4] sm:$0xff]
        %v1751 = vld [vmem:[%s4 + $0x8] sm:$0xff]
        %v1752 = vld [vmem:[%s4 + $0x10] sm:$0xff]
        %v1753 = vld [vmem:[%s4 + $0x18] sm:$0xff]
        %v1754 = vld [vmem:[%s4 + $0x20] sm:$0xff]
        %v1755 = vld [vmem:[%s4 + $0x28] sm:$0xff]
        %v1756 = vld [vmem:[%s4 + $0x30] sm:$0xff]
        %v1757 = vld [vmem:[%s4 + $0x38] sm:$0xff]
        %v1758 = vld [vmem:[%s4 + $0x40] sm:$0xff]
        %v1759 = vld [vmem:[%s4 + $0x48] sm:$0xff]
        %v1760 = vld [vmem:[%s4 + $0x50] sm:$0xff]
        %v1761 = vld [vmem:[%s4 + $0x58] sm:$0xff]
        %v1762 = vld [vmem:[%s4 + $0x60] sm:$0xff]
        %v1763 = vld [vmem:[%s4 + $0x68] sm:$0xff]
        %v1764 = vld [vmem:[%s4 + $0x70] sm:$0xff]
        %v1765 = vld [vmem:[%s4 + $0x78] sm:$0xff]
        %1766 = vmatpush.msra.mxu0 %v1746
        %1767 = vmatpush.msra.mxu0 %v1742
        %1768 = vmatpush.msra.mxu0 %v1738
        %1769 = vmatpush.msra.mxu0 %v1734
        %1770 = vmatpush.msra.mxu0 %v1730
        %1771 = vmatpush.msra.mxu0 %v1726
        %1772 = vmatpush.msra.mxu0 %v1722
        %1773 = vmatpush.msra.mxu0 %v1718
        %1774 = vmatpush.msra.mxu0 %v1714
        %1775 = vmatpush.msra.mxu0 %v1710
        %1776 = vmatpush.msra.mxu0 %v1706
        %1777 = vmatpush.msra.mxu0 %v1702
        %1778 = vmatpush.msra.mxu0 %v1698
        %1779 = vmatpush.msra.mxu0 %v1694
        %1780 = vmatpush.msra.mxu0 %v1690
        %1781 = vmatpush.msra.mxu0 %v1686
        %1782 = vmatmul.f32.gmra.mxu0 %v1750
        %v1783 = vpop.f32.mrf.mxu0
        %v1784 = vadd.f32 0.0, %v1783
        %1785 = vmatmul.f32.gmra.mxu0 %v1751
        %v1786 = vpop.f32.mrf.mxu0
        %v1787 = vadd.f32 0.0, %v1786
        %1788 = vmatmul.f32.gmra.mxu0 %v1752
        %v1789 = vpop.f32.mrf.mxu0
        %v1790 = vadd.f32 0.0, %v1789
        %1791 = vmatmul.f32.gmra.mxu0 %v1753
        %v1792 = vpop.f32.mrf.mxu0
        %v1793 = vadd.f32 0.0, %v1792
        %1794 = vmatmul.f32.gmra.mxu0 %v1754
        %v1795 = vpop.f32.mrf.mxu0
        %v1796 = vadd.f32 0.0, %v1795
        %1797 = vmatmul.f32.gmra.mxu0 %v1755
        %v1798 = vpop.f32.mrf.mxu0
        %v1799 = vadd.f32 0.0, %v1798
        %1800 = vmatmul.f32.gmra.mxu0 %v1756
        %v1801 = vpop.f32.mrf.mxu0
        %v1802 = vadd.f32 0.0, %v1801
        %1803 = vmatmul.f32.gmra.mxu0 %v1757
        %v1804 = vpop.f32.mrf.mxu0
        %v1805 = vadd.f32 0.0, %v1804
        %1806 = vmatmul.f32.gmra.mxu0 %v1758
        %v1807 = vpop.f32.mrf.mxu0
        %v1808 = vadd.f32 0.0, %v1807
        %1809 = vmatmul.f32.gmra.mxu0 %v1759
        %v1810 = vpop.f32.mrf.mxu0
        %v1811 = vadd.f32 0.0, %v1810
        %1812 = vmatmul.f32.gmra.mxu0 %v1760
        %v1813 = vpop.f32.mrf.mxu0
        %v1814 = vadd.f32 0.0, %v1813
        %1815 = vmatmul.f32.gmra.mxu0 %v1761
        %v1816 = vpop.f32.mrf.mxu0
        %v1817 = vadd.f32 0.0, %v1816
        %1818 = vmatmul.f32.gmra.mxu0 %v1762
        %v1819 = vpop.f32.mrf.mxu0
        %v1820 = vadd.f32 0.0, %v1819
        %1821 = vmatmul.f32.gmra.mxu0 %v1763
        %v1822 = vpop.f32.mrf.mxu0
        %v1823 = vadd.f32 0.0, %v1822
        %1824 = vmatmul.f32.gmra.mxu0 %v1764
        %v1825 = vpop.f32.mrf.mxu0
        %v1826 = vadd.f32 0.0, %v1825
        %1827 = vmatmul.f32.gmra.mxu0 %v1765
        %v1828 = vpop.f32.mrf.mxu0
        %v1829 = vadd.f32 0.0, %v1828
        %1830 = vdwg.mxu0
        %1831 = vmatpush.msra.mxu0 %v1747
        %1832 = vmatpush.msra.mxu0 %v1743
        %1833 = vmatpush.msra.mxu0 %v1739
        %1834 = vmatpush.msra.mxu0 %v1735
        %1835 = vmatpush.msra.mxu0 %v1731
        %1836 = vmatpush.msra.mxu0 %v1727
        %1837 = vmatpush.msra.mxu0 %v1723
        %1838 = vmatpush.msra.mxu0 %v1719
        %1839 = vmatpush.msra.mxu0 %v1715
        %1840 = vmatpush.msra.mxu0 %v1711
        %1841 = vmatpush.msra.mxu0 %v1707
        %1842 = vmatpush.msra.mxu0 %v1703
        %1843 = vmatpush.msra.mxu0 %v1699
        %1844 = vmatpush.msra.mxu0 %v1695
        %1845 = vmatpush.msra.mxu0 %v1691
        %1846 = vmatpush.msra.mxu0 %v1687
        %1847 = vmatmul.f32.gmra.mxu0 %v1750
        %v1848 = vpop.f32.mrf.mxu0
        %v1849 = vadd.f32 0.0, %v1848
        %1850 = vmatmul.f32.gmra.mxu0 %v1751
        %v1851 = vpop.f32.mrf.mxu0
        %v1852 = vadd.f32 0.0, %v1851
        %1853 = vmatmul.f32.gmra.mxu0 %v1752
        %v1854 = vpop.f32.mrf.mxu0
        %v1855 = vadd.f32 0.0, %v1854
        %1856 = vmatmul.f32.gmra.mxu0 %v1753
        %v1857 = vpop.f32.mrf.mxu0
        %v1858 = vadd.f32 0.0, %v1857
        %1859 = vmatmul.f32.gmra.mxu0 %v1754
        %v1860 = vpop.f32.mrf.mxu0
        %v1861 = vadd.f32 0.0, %v1860
        %1862 = vmatmul.f32.gmra.mxu0 %v1755
        %v1863 = vpop.f32.mrf.mxu0
        %v1864 = vadd.f32 0.0, %v1863
        %1865 = vmatmul.f32.gmra.mxu0 %v1756
        %v1866 = vpop.f32.mrf.mxu0
        %v1867 = vadd.f32 0.0, %v1866
        %1868 = vmatmul.f32.gmra.mxu0 %v1757
        %v1869 = vpop.f32.mrf.mxu0
        %v1870 = vadd.f32 0.0, %v1869
        %1871 = vmatmul.f32.gmra.mxu0 %v1758
        %v1872 = vpop.f32.mrf.mxu0
        %v1873 = vadd.f32 0.0, %v1872
        %1874 = vmatmul.f32.gmra.mxu0 %v1759
        %v1875 = vpop.f32.mrf.mxu0
        %v1876 = vadd.f32 0.0, %v1875
        %1877 = vmatmul.f32.gmra.mxu0 %v1760
        %v1878 = vpop.f32.mrf.mxu0
        %v1879 = vadd.f32 0.0, %v1878
        %1880 = vmatmul.f32.gmra.mxu0 %v1761
        %v1881 = vpop.f32.mrf.mxu0
        %v1882 = vadd.f32 0.0, %v1881
        %1883 = vmatmul.f32.gmra.mxu0 %v1762
        %v1884 = vpop.f32.mrf.mxu0
        %v1885 = vadd.f32 0.0, %v1884
        %1886 = vmatmul.f32.gmra.mxu0 %v1763
        %v1887 = vpop.f32.mrf.mxu0
        %v1888 = vadd.f32 0.0, %v1887
        %1889 = vmatmul.f32.gmra.mxu0 %v1764
        %v1890 = vpop.f32.mrf.mxu0
        %v1891 = vadd.f32 0.0, %v1890
        %1892 = vmatmul.f32.gmra.mxu0 %v1765
        %v1893 = vpop.f32.mrf.mxu0
        %v1894 = vadd.f32 0.0, %v1893
        %1895 = vdwg.mxu0
        %1896 = vmatpush.msra.mxu0 %v1748
        %1897 = vmatpush.msra.mxu0 %v1744
        %1898 = vmatpush.msra.mxu0 %v1740
        %1899 = vmatpush.msra.mxu0 %v1736
        %1900 = vmatpush.msra.mxu0 %v1732
        %1901 = vmatpush.msra.mxu0 %v1728
        %1902 = vmatpush.msra.mxu0 %v1724
        %1903 = vmatpush.msra.mxu0 %v1720
        %1904 = vmatpush.msra.mxu0 %v1716
        %1905 = vmatpush.msra.mxu0 %v1712
        %1906 = vmatpush.msra.mxu0 %v1708
        %1907 = vmatpush.msra.mxu0 %v1704
        %1908 = vmatpush.msra.mxu0 %v1700
        %1909 = vmatpush.msra.mxu0 %v1696
        %1910 = vmatpush.msra.mxu0 %v1692
        %1911 = vmatpush.msra.mxu0 %v1688
        %1912 = vmatmul.f32.gmra.mxu0 %v1750
        %v1913 = vpop.f32.mrf.mxu0
        %v1914 = vadd.f32 0.0, %v1913
        %1915 = vmatmul.f32.gmra.mxu0 %v1751
        %v1916 = vpop.f32.mrf.mxu0
        %v1917 = vadd.f32 0.0, %v1916
        %1918 = vmatmul.f32.gmra.mxu0 %v1752
        %v1919 = vpop.f32.mrf.mxu0
        %v1920 = vadd.f32 0.0, %v1919
        %1921 = vmatmul.f32.gmra.mxu0 %v1753
        %v1922 = vpop.f32.mrf.mxu0
        %v1923 = vadd.f32 0.0, %v1922
        %1924 = vmatmul.f32.gmra.mxu0 %v1754
        %v1925 = vpop.f32.mrf.mxu0
        %v1926 = vadd.f32 0.0, %v1925
        %1927 = vmatmul.f32.gmra.mxu0 %v1755
        %v1928 = vpop.f32.mrf.mxu0
        %v1929 = vadd.f32 0.0, %v1928
        %1930 = vmatmul.f32.gmra.mxu0 %v1756
        %v1931 = vpop.f32.mrf.mxu0
        %v1932 = vadd.f32 0.0, %v1931
        %1933 = vmatmul.f32.gmra.mxu0 %v1757
        %v1934 = vpop.f32.mrf.mxu0
        %v1935 = vadd.f32 0.0, %v1934
        %1936 = vmatmul.f32.gmra.mxu0 %v1758
        %v1937 = vpop.f32.mrf.mxu0
        %v1938 = vadd.f32 0.0, %v1937
        %1939 = vmatmul.f32.gmra.mxu0 %v1759
        %v1940 = vpop.f32.mrf.mxu0
        %v1941 = vadd.f32 0.0, %v1940
        %1942 = vmatmul.f32.gmra.mxu0 %v1760
        %v1943 = vpop.f32.mrf.mxu0
        %v1944 = vadd.f32 0.0, %v1943
        %1945 = vmatmul.f32.gmra.mxu0 %v1761
        %v1946 = vpop.f32.mrf.mxu0
        %v1947 = vadd.f32 0.0, %v1946
        %1948 = vmatmul.f32.gmra.mxu0 %v1762
        %v1949 = vpop.f32.mrf.mxu0
        %v1950 = vadd.f32 0.0, %v1949
        %1951 = vmatmul.f32.gmra.mxu0 %v1763
        %v1952 = vpop.f32.mrf.mxu0
        %v1953 = vadd.f32 0.0, %v1952
        %1954 = vmatmul.f32.gmra.mxu0 %v1764
        %v1955 = vpop.f32.mrf.mxu0
        %v1956 = vadd.f32 0.0, %v1955
        %1957 = vmatmul.f32.gmra.mxu0 %v1765
        %v1958 = vpop.f32.mrf.mxu0
        %v1959 = vadd.f32 0.0, %v1958
        %1960 = vdwg.mxu0
        %1961 = vmatpush.msra.mxu0 %v1749
        %1962 = vmatpush.msra.mxu0 %v1745
        %1963 = vmatpush.msra.mxu0 %v1741
        %1964 = vmatpush.msra.mxu0 %v1737
        %1965 = vmatpush.msra.mxu0 %v1733
        %1966 = vmatpush.msra.mxu0 %v1729
        %1967 = vmatpush.msra.mxu0 %v1725
        %1968 = vmatpush.msra.mxu0 %v1721
        %1969 = vmatpush.msra.mxu0 %v1717
        %1970 = vmatpush.msra.mxu0 %v1713
        %1971 = vmatpush.msra.mxu0 %v1709
        %1972 = vmatpush.msra.mxu0 %v1705
        %1973 = vmatpush.msra.mxu0 %v1701
        %1974 = vmatpush.msra.mxu0 %v1697
        %1975 = vmatpush.msra.mxu0 %v1693
        %1976 = vmatpush.msra.mxu0 %v1689
        %1977 = vmatmul.f32.gmra.mxu0 %v1750
        %v1978 = vpop.f32.mrf.mxu0
        %v1979 = vadd.f32 0.0, %v1978
        %1980 = vmatmul.f32.gmra.mxu0 %v1751
        %v1981 = vpop.f32.mrf.mxu0
        %v1982 = vadd.f32 0.0, %v1981
        %1983 = vmatmul.f32.gmra.mxu0 %v1752
        %v1984 = vpop.f32.mrf.mxu0
        %v1985 = vadd.f32 0.0, %v1984
        %1986 = vmatmul.f32.gmra.mxu0 %v1753
        %v1987 = vpop.f32.mrf.mxu0
        %v1988 = vadd.f32 0.0, %v1987
        %1989 = vmatmul.f32.gmra.mxu0 %v1754
        %v1990 = vpop.f32.mrf.mxu0
        %v1991 = vadd.f32 0.0, %v1990
        %1992 = vmatmul.f32.gmra.mxu0 %v1755
        %v1993 = vpop.f32.mrf.mxu0
        %v1994 = vadd.f32 0.0, %v1993
        %1995 = vmatmul.f32.gmra.mxu0 %v1756
        %v1996 = vpop.f32.mrf.mxu0
        %v1997 = vadd.f32 0.0, %v1996
        %1998 = vmatmul.f32.gmra.mxu0 %v1757
        %v1999 = vpop.f32.mrf.mxu0
        %v2000 = vadd.f32 0.0, %v1999
        %2001 = vmatmul.f32.gmra.mxu0 %v1758
        %v2002 = vpop.f32.mrf.mxu0
        %v2003 = vadd.f32 0.0, %v2002
        %2004 = vmatmul.f32.gmra.mxu0 %v1759
        %v2005 = vpop.f32.mrf.mxu0
        %v2006 = vadd.f32 0.0, %v2005
        %2007 = vmatmul.f32.gmra.mxu0 %v1760
        %v2008 = vpop.f32.mrf.mxu0
        %v2009 = vadd.f32 0.0, %v2008
        %2010 = vmatmul.f32.gmra.mxu0 %v1761
        %v2011 = vpop.f32.mrf.mxu0
        %v2012 = vadd.f32 0.0, %v2011
        %2013 = vmatmul.f32.gmra.mxu0 %v1762
        %v2014 = vpop.f32.mrf.mxu0
        %v2015 = vadd.f32 0.0, %v2014
        %2016 = vmatmul.f32.gmra.mxu0 %v1763
        %v2017 = vpop.f32.mrf.mxu0
        %v2018 = vadd.f32 0.0, %v2017
        %2019 = vmatmul.f32.gmra.mxu0 %v1764
        %v2020 = vpop.f32.mrf.mxu0
        %v2021 = vadd.f32 0.0, %v2020
        %2022 = vmatmul.f32.gmra.mxu0 %v1765
        %v2023 = vpop.f32.mrf.mxu0
        %v2024 = vadd.f32 0.0, %v2023
        %2025 = vdwg.mxu0
        %2026 = vst [vmem:[%s1042] sm:$0xff] %v1784
        %2027 = vst [vmem:[%s1042 + $0x8] sm:$0xff] %v1849
        %2028 = vst [vmem:[%s1042 + $0x10] sm:$0xff] %v1914
        %2029 = vst [vmem:[%s1042 + $0x18] sm:$0xff] %v1979
        %2030 = vst [vmem:[%s1042 + $0x20] sm:$0xff] %v1787
        %2031 = vst [vmem:[%s1042 + $0x28] sm:$0xff] %v1852
        %2032 = vst [vmem:[%s1042 + $0x30] sm:$0xff] %v1917
        %2033 = vst [vmem:[%s1042 + $0x38] sm:$0xff] %v1982
        %2034 = vst [vmem:[%s1042 + $0x40] sm:$0xff] %v1790
        %2035 = vst [vmem:[%s1042 + $0x48] sm:$0xff] %v1855
        %2036 = vst [vmem:[%s1042 + $0x50] sm:$0xff] %v1920
        %2037 = vst [vmem:[%s1042 + $0x58] sm:$0xff] %v1985
        %2038 = vst [vmem:[%s1042 + $0x60] sm:$0xff] %v1793
        %2039 = vst [vmem:[%s1042 + $0x68] sm:$0xff] %v1858
        %2040 = vst [vmem:[%s1042 + $0x70] sm:$0xff] %v1923
        %2041 = vst [vmem:[%s1042 + $0x78] sm:$0xff] %v1988
        %2042 = vst [vmem:[%s1042 + $0x80] sm:$0xff] %v1796
        %2043 = vst [vmem:[%s1042 + $0x88] sm:$0xff] %v1861
        %2044 = vst [vmem:[%s1042 + $0x90] sm:$0xff] %v1926
        %2045 = vst [vmem:[%s1042 + $0x98] sm:$0xff] %v1991
        %2046 = vst [vmem:[%s1042 + $0xa0] sm:$0xff] %v1799
        %2047 = vst [vmem:[%s1042 + $0xa8] sm:$0xff] %v1864
        %2048 = vst [vmem:[%s1042 + $0xb0] sm:$0xff] %v1929
        %2049 = vst [vmem:[%s1042 + $0xb8] sm:$0xff] %v1994
        %2050 = vst [vmem:[%s1042 + $0xc0] sm:$0xff] %v1802
        %2051 = vst [vmem:[%s1042 + $0xc8] sm:$0xff] %v1867
        %2052 = vst [vmem:[%s1042 + $0xd0] sm:$0xff] %v1932
        %2053 = vst [vmem:[%s1042 + $0xd8] sm:$0xff] %v1997
        %2054 = vst [vmem:[%s1042 + $0xe0] sm:$0xff] %v1805
        %2055 = vst [vmem:[%s1042 + $0xe8] sm:$0xff] %v1870
        %2056 = vst [vmem:[%s1042 + $0xf0] sm:$0xff] %v1935
        %2057 = vst [vmem:[%s1042 + $0xf8] sm:$0xff] %v2000
        %2058 = vst [vmem:[%s1042 + $0x100] sm:$0xff] %v1808
        %2059 = vst [vmem:[%s1042 + $0x108] sm:$0xff] %v1873
        %2060 = vst [vmem:[%s1042 + $0x110] sm:$0xff] %v1938
        %2061 = vst [vmem:[%s1042 + $0x118] sm:$0xff] %v2003
        %2062 = vst [vmem:[%s1042 + $0x120] sm:$0xff] %v1811
        %2063 = vst [vmem:[%s1042 + $0x128] sm:$0xff] %v1876
        %2064 = vst [vmem:[%s1042 + $0x130] sm:$0xff] %v1941
        %2065 = vst [vmem:[%s1042 + $0x138] sm:$0xff] %v2006
        %2066 = vst [vmem:[%s1042 + $0x140] sm:$0xff] %v1814
        %2067 = vst [vmem:[%s1042 + $0x148] sm:$0xff] %v1879
        %2068 = vst [vmem:[%s1042 + $0x150] sm:$0xff] %v1944
        %2069 = vst [vmem:[%s1042 + $0x158] sm:$0xff] %v2009
        %2070 = vst [vmem:[%s1042 + $0x160] sm:$0xff] %v1817
        %2071 = vst [vmem:[%s1042 + $0x168] sm:$0xff] %v1882
        %2072 = vst [vmem:[%s1042 + $0x170] sm:$0xff] %v1947
        %2073 = vst [vmem:[%s1042 + $0x178] sm:$0xff] %v2012
        %2074 = vst [vmem:[%s1042 + $0x180] sm:$0xff] %v1820
        %2075 = vst [vmem:[%s1042 + $0x188] sm:$0xff] %v1885
        %2076 = vst [vmem:[%s1042 + $0x190] sm:$0xff] %v1950
        %2077 = vst [vmem:[%s1042 + $0x198] sm:$0xff] %v2015
        %2078 = vst [vmem:[%s1042 + $0x1a0] sm:$0xff] %v1823
        %2079 = vst [vmem:[%s1042 + $0x1a8] sm:$0xff] %v1888
        %2080 = vst [vmem:[%s1042 + $0x1b0] sm:$0xff] %v1953
        %2081 = vst [vmem:[%s1042 + $0x1b8] sm:$0xff] %v2018
        %2082 = vst [vmem:[%s1042 + $0x1c0] sm:$0xff] %v1826
        %2083 = vst [vmem:[%s1042 + $0x1c8] sm:$0xff] %v1891
        %2084 = vst [vmem:[%s1042 + $0x1d0] sm:$0xff] %v1956
        %2085 = vst [vmem:[%s1042 + $0x1d8] sm:$0xff] %v2021
        %2086 = vst [vmem:[%s1042 + $0x1e0] sm:$0xff] %v1829
        %2087 = vst [vmem:[%s1042 + $0x1e8] sm:$0xff] %v1894
        %2088 = vst [vmem:[%s1042 + $0x1f0] sm:$0xff] %v1959
        %2089 = vst [vmem:[%s1042 + $0x1f8] sm:$0xff] %v2024
        %s2090 = sand.u32 %s157, 1
        %s2091 = sand.u32 %s157, 1
        %s2092 = smul.addr %s2091, 512
        %s2093 = scalar_lea.vmem [#allocation4], %s2092
        // Predicated region
        $region173: #{fused_forward.1} parent=163 // pred_check
          %p2094 = pneg %p167
        $region174: #{fused_forward.1} parent=163 // pred_check_branch
          %2096 = sbr.rel (%p2094) target = $region176
        $region175: #{fused_forward.1} parent=163 // pred_region
          %s2097 = smul.u32 4, %s21
          %s2098 = ssub.s32 7, %s2097
          %p2099 = scmp.lt.s32.totalorder %s2098, 4
          %s2100 = scalar_select %p2099, %s2098, 4
          %s2101 = smul.u32 128, %s2100
          %p2102 = scmp.ne.s32.totalorder 0, %s2101
          %s2103 = smul.addr %s20, 112
          %s2104 = sadd.s32 %s2097, %s2103
          %s2105 = smul.addr %s2104, 8
          %s2106 = scalar_lea.vmem %s5, %s2105
          %s2107 = smul.u32 %s2100, 8
          // Predicated region
          $region177: #{fused_forward.1} parent=175 // pred_check
            %p2108 = pneg %p2102
          $region178: #{fused_forward.1} parent=175 // pred_check_branch
            %2110 = sbr.rel (%p2108) target = $region180
          $region179: #{fused_forward.1} parent=175 // pred_region
            %p2111 = scmp.lt.u32.totalorder %s2107, 8
            %p2112 = pneg %p2111
            // Predicated region
            $region181: #{fused_forward.1} parent=179 // pred_check
              _
            $region182: #{fused_forward.1} parent=179 // pred_check_branch
              %2114 = sbr.rel (%p2111) target = $region184
            $region183: #{fused_forward.1} parent=179 // pred_region
              %s2160 = sand.u32 %s2107, 7
              %p2161 = scmp.eq.s32.totalorder %s2160, 0
              // Predicated region
              $region196: #{fused_forward.1} parent=183 // pred_check
                %p2162 = pneg %p2161
              $region197: #{fused_forward.1} parent=183 // pred_check_branch
                %2164 = sbr.rel (%p2162) target = $region199
              $region198: #{fused_forward.1} parent=183 // pred_region
                %s2165 = sshrl.u32 %s2107, 3
                %s2166 = sshrl.u32 %s2165, 1
                // While loop
                $region200: #{fused_forward.1} parent=198 // loop_pre_header
                  _
                $region201: #{fused_forward.1} parent=198 // loop_header
                  %s2168 = sphi 0, %s2170
                  %p2169 = scmp.ge.s32.totalorder %s2168, %s2166
                  %s2173 = sphi 0, %s2242
                  %s2174 = sphi %s2093, %s2245
                  %s2175 = sphi %s2106, %s2246
                $region202: #{fused_forward.1} parent=198 // loop_header_branch
                  %2172 = sbr.rel (%p2169) target = $region206
                $region203: #{fused_forward.1} parent=198 // loop_body
                  %v2176 = vld [vmem:[%s2174] sm:$0xff]
                  %2177 = vst [vmem:[%s2175] sm:$0xff] %v2176
                  %v2178 = vld [vmem:[%s2174 + $0x8] sm:$0xff]
                  %2179 = vst [vmem:[%s2175 + $0x8] sm:$0xff] %v2178
                  %v2180 = vld [vmem:[%s2174 + $0x20] sm:$0xff]
                  %2181 = vst [vmem:[%s2175 + $0x38] sm:$0xff] %v2180
                  %v2182 = vld [vmem:[%s2174 + $0x28] sm:$0xff]
                  %2183 = vst [vmem:[%s2175 + $0x40] sm:$0xff] %v2182
                  %v2184 = vld [vmem:[%s2174 + $0x40] sm:$0xff]
                  %2185 = vst [vmem:[%s2175 + $0x70] sm:$0xff] %v2184
                  %v2186 = vld [vmem:[%s2174 + $0x48] sm:$0xff]
                  %2187 = vst [vmem:[%s2175 + $0x78] sm:$0xff] %v2186
                  %v2188 = vld [vmem:[%s2174 + $0x60] sm:$0xff]
                  %2189 = vst [vmem:[%s2175 + $0xa8] sm:$0xff] %v2188
                  %v2190 = vld [vmem:[%s2174 + $0x68] sm:$0xff]
                  %2191 = vst [vmem:[%s2175 + $0xb0] sm:$0xff] %v2190
                  %v2192 = vld [vmem:[%s2174 + $0x80] sm:$0xff]
                  %2193 = vst [vmem:[%s2175 + $0xe0] sm:$0xff] %v2192
                  %v2194 = vld [vmem:[%s2174 + $0x88] sm:$0xff]
                  %2195 = vst [vmem:[%s2175 + $0xe8] sm:$0xff] %v2194
                  %v2196 = vld [vmem:[%s2174 + $0xa0] sm:$0xff]
                  %2197 = vst [vmem:[%s2175 + $0x118] sm:$0xff] %v2196
                  %v2198 = vld [vmem:[%s2174 + $0xa8] sm:$0xff]
                  %2199 = vst [vmem:[%s2175 + $0x120] sm:$0xff] %v2198
                  %v2200 = vld [vmem:[%s2174 + $0xc0] sm:$0xff]
                  %2201 = vst [vmem:[%s2175 + $0x150] sm:$0xff] %v2200
                  %v2202 = vld [vmem:[%s2174 + $0xc8] sm:$0xff]
                  %2203 = vst [vmem:[%s2175 + $0x158] sm:$0xff] %v2202
                  %v2204 = vld [vmem:[%s2174 + $0xe0] sm:$0xff]
                  %2205 = vst [vmem:[%s2175 + $0x188] sm:$0xff] %v2204
                  %v2206 = vld [vmem:[%s2174 + $0xe8] sm:$0xff]
                  %2207 = vst [vmem:[%s2175 + $0x190] sm:$0xff] %v2206
                  %v2208 = vld [vmem:[%s2174 + $0x100] sm:$0xff]
                  %2209 = vst [vmem:[%s2175 + $0x1c0] sm:$0xff] %v2208
                  %v2210 = vld [vmem:[%s2174 + $0x108] sm:$0xff]
                  %2211 = vst [vmem:[%s2175 + $0x1c8] sm:$0xff] %v2210
                  %v2212 = vld [vmem:[%s2174 + $0x120] sm:$0xff]
                  %2213 = vst [vmem:[%s2175 + $0x1f8] sm:$0xff] %v2212
                  %v2214 = vld [vmem:[%s2174 + $0x128] sm:$0xff]
                  %2215 = vst [vmem:[%s2175 + $0x200] sm:$0xff] %v2214
                  %v2216 = vld [vmem:[%s2174 + $0x140] sm:$0xff]
                  %2217 = vst [vmem:[%s2175 + $0x230] sm:$0xff] %v2216
                  %v2218 = vld [vmem:[%s2174 + $0x148] sm:$0xff]
                  %2219 = vst [vmem:[%s2175 + $0x238] sm:$0xff] %v2218
                  %v2220 = vld [vmem:[%s2174 + $0x160] sm:$0xff]
                  %2221 = vst [vmem:[%s2175 + $0x268] sm:$0xff] %v2220
                  %v2222 = vld [vmem:[%s2174 + $0x168] sm:$0xff]
                  %2223 = vst [vmem:[%s2175 + $0x270] sm:$0xff] %v2222
                  %v2224 = vld [vmem:[%s2174 + $0x180] sm:$0xff]
                  %2225 = vst [vmem:[%s2175 + $0x2a0] sm:$0xff] %v2224
                  %v2226 = vld [vmem:[%s2174 + $0x188] sm:$0xff]
                  %2227 = vst [vmem:[%s2175 + $0x2a8] sm:$0xff] %v2226
                  %v2228 = vld [vmem:[%s2174 + $0x1a0] sm:$0xff]
                  %2229 = vst [vmem:[%s2175 + $0x2d8] sm:$0xff] %v2228
                  %v2230 = vld [vmem:[%s2174 + $0x1a8] sm:$0xff]
                  %2231 = vst [vmem:[%s2175 + $0x2e0] sm:$0xff] %v2230
                  %v2232 = vld [vmem:[%s2174 + $0x1c0] sm:$0xff]
                  %2233 = vst [vmem:[%s2175 + $0x310] sm:$0xff] %v2232
                  %v2234 = vld [vmem:[%s2174 + $0x1c8] sm:$0xff]
                  %2235 = vst [vmem:[%s2175 + $0x318] sm:$0xff] %v2234
                  %v2236 = vld [vmem:[%s2174 + $0x1e0] sm:$0xff]
                  %2237 = vst [vmem:[%s2175 + $0x348] sm:$0xff] %v2236
                  %v2238 = vld [vmem:[%s2174 + $0x1e8] sm:$0xff]
                  %2239 = vst [vmem:[%s2175 + $0x350] sm:$0xff] %v2238
                  %s2240 = sadd.s32 1, %s2173
                  %p2241 = scmp.ge.s32.totalorder %s2240, %s2166
                  %s2242 = scalar_select %p2241, 0, %s2240
                  %s2243 = smul.u32 %s2242, 16
                  %s2244 = smul.u32 %s2242, 16
                  %s2245 = scalar_lea.vmem %s2093, %s2243 [#allocation4]
                  %s2246 = scalar_lea.vmem %s2106, %s2244
                $region204: #{fused_forward.1} parent=198 // loop_footer
                  %s2170 = sadd.s32 %s2168, 1
                $region205: #{fused_forward.1} parent=198 // loop_footer_branch
                  %2167 = sbr.rel target = $region201
                $region206: #{fused_forward.1} parent=198 // loop_exit
                  _
                %s2247 = sshrl.u32 %s2165, 1
                %s2248 = sand.u32 %s2165, 1
                %s2249 = smul.u32 %s2247, 2
                %s2250 = smul.u32 8, %s2249
                %s2251 = scalar_lea.vmem %s2093, %s2250 [#allocation4]
                %s2252 = smul.u32 8, %s2249
                %s2253 = scalar_lea.vmem %s2106, %s2252
                // While loop
                $region207: #{fused_forward.1} parent=198 // loop_pre_header
                  _
                $region208: #{fused_forward.1} parent=198 // loop_header
                  %s2255 = sphi 0, %s2257
                  %p2256 = scmp.ge.s32.totalorder %s2255, %s2248
                  %s2260 = sphi 0, %s2297
                  %s2261 = sphi %s2251, %s2300
                  %s2262 = sphi %s2253, %s2301
                $region209: #{fused_forward.1} parent=198 // loop_header_branch
                  %2259 = sbr.rel (%p2256) target = $region213
                $region210: #{fused_forward.1} parent=198 // loop_body
                  %v2263 = vld [vmem:[%s2261] sm:$0xff]
                  %2264 = vst [vmem:[%s2262] sm:$0xff] %v2263
                  %v2265 = vld [vmem:[%s2261 + $0x20] sm:$0xff]
                  %2266 = vst [vmem:[%s2262 + $0x38] sm:$0xff] %v2265
                  %v2267 = vld [vmem:[%s2261 + $0x40] sm:$0xff]
                  %2268 = vst [vmem:[%s2262 + $0x70] sm:$0xff] %v2267
                  %v2269 = vld [vmem:[%s2261 + $0x60] sm:$0xff]
                  %2270 = vst [vmem:[%s2262 + $0xa8] sm:$0xff] %v2269
                  %v2271 = vld [vmem:[%s2261 + $0x80] sm:$0xff]
                  %2272 = vst [vmem:[%s2262 + $0xe0] sm:$0xff] %v2271
                  %v2273 = vld [vmem:[%s2261 + $0xa0] sm:$0xff]
                  %2274 = vst [vmem:[%s2262 + $0x118] sm:$0xff] %v2273
                  %v2275 = vld [vmem:[%s2261 + $0xc0] sm:$0xff]
                  %2276 = vst [vmem:[%s2262 + $0x150] sm:$0xff] %v2275
                  %v2277 = vld [vmem:[%s2261 + $0xe0] sm:$0xff]
                  %2278 = vst [vmem:[%s2262 + $0x188] sm:$0xff] %v2277
                  %v2279 = vld [vmem:[%s2261 + $0x100] sm:$0xff]
                  %2280 = vst [vmem:[%s2262 + $0x1c0] sm:$0xff] %v2279
                  %v2281 = vld [vmem:[%s2261 + $0x120] sm:$0xff]
                  %2282 = vst [vmem:[%s2262 + $0x1f8] sm:$0xff] %v2281
                  %v2283 = vld [vmem:[%s2261 + $0x140] sm:$0xff]
                  %2284 = vst [vmem:[%s2262 + $0x230] sm:$0xff] %v2283
                  %v2285 = vld [vmem:[%s2261 + $0x160] sm:$0xff]
                  %2286 = vst [vmem:[%s2262 + $0x268] sm:$0xff] %v2285
                  %v2287 = vld [vmem:[%s2261 + $0x180] sm:$0xff]
                  %2288 = vst [vmem:[%s2262 + $0x2a0] sm:$0xff] %v2287
                  %v2289 = vld [vmem:[%s2261 + $0x1a0] sm:$0xff]
                  %2290 = vst [vmem:[%s2262 + $0x2d8] sm:$0xff] %v2289
                  %v2291 = vld [vmem:[%s2261 + $0x1c0] sm:$0xff]
                  %2292 = vst [vmem:[%s2262 + $0x310] sm:$0xff] %v2291
                  %v2293 = vld [vmem:[%s2261 + $0x1e0] sm:$0xff]
                  %2294 = vst [vmem:[%s2262 + $0x348] sm:$0xff] %v2293
                  %s2295 = sadd.s32 1, %s2260
                  %p2296 = scmp.ge.s32.totalorder %s2295, %s2248
                  %s2297 = scalar_select %p2296, 0, %s2295
                  %s2298 = smul.u32 %s2297, 8
                  %s2299 = smul.u32 %s2297, 8
                  %s2300 = scalar_lea.vmem %s2251, %s2298 [#allocation4]
                  %s2301 = scalar_lea.vmem %s2253, %s2299
                $region211: #{fused_forward.1} parent=198 // loop_footer
                  %s2257 = sadd.s32 %s2255, 1
                $region212: #{fused_forward.1} parent=198 // loop_footer_branch
                  %2254 = sbr.rel target = $region208
                $region213: #{fused_forward.1} parent=198 // loop_exit
                  _
              $region199: #{fused_forward.1} parent=183 // pred_fallthru
                _
              %p2302 = pneg %p2161
              // Predicated region
              $region214: #{fused_forward.1} parent=183 // pred_check
                _
              $region215: #{fused_forward.1} parent=183 // pred_check_branch
                %2304 = sbr.rel (%p2161) target = $region217
              $region216: #{fused_forward.1} parent=183 // pred_region
                %s2305 = sand.u32 %s2107, 7
                %s2306 = ssub.s32 %s2107, %s2305
                %s2307 = scalar_lea.vmem %s2093, %s2306 [#allocation4]
                %s2308 = ssub.s32 %s2107, %s2305
                %s2309 = scalar_lea.vmem %s2106, %s2308
                %s2310 = sshrl.u32 %s2107, 3
                %s2311 = sshrl.u32 %s2310, 1
                // While loop
                $region218: #{fused_forward.1} parent=216 // loop_pre_header
                  _
                $region219: #{fused_forward.1} parent=216 // loop_header
                  %s2313 = sphi 0, %s2315
                  %p2314 = scmp.ge.s32.totalorder %s2313, %s2311
                  %s2318 = sphi 0, %s2387
                  %s2319 = sphi %s2093, %s2390
                  %s2320 = sphi %s2106, %s2391
                $region220: #{fused_forward.1} parent=216 // loop_header_branch
                  %2317 = sbr.rel (%p2314) target = $region224
                $region221: #{fused_forward.1} parent=216 // loop_body
                  %v2321 = vld [vmem:[%s2319] sm:$0xff]
                  %2322 = vst [vmem:[%s2320] sm:$0xff] %v2321
                  %v2323 = vld [vmem:[%s2319 + $0x8] sm:$0xff]
                  %2324 = vst [vmem:[%s2320 + $0x8] sm:$0xff] %v2323
                  %v2325 = vld [vmem:[%s2319 + $0x20] sm:$0xff]
                  %2326 = vst [vmem:[%s2320 + $0x38] sm:$0xff] %v2325
                  %v2327 = vld [vmem:[%s2319 + $0x28] sm:$0xff]
                  %2328 = vst [vmem:[%s2320 + $0x40] sm:$0xff] %v2327
                  %v2329 = vld [vmem:[%s2319 + $0x40] sm:$0xff]
                  %2330 = vst [vmem:[%s2320 + $0x70] sm:$0xff] %v2329
                  %v2331 = vld [vmem:[%s2319 + $0x48] sm:$0xff]
                  %2332 = vst [vmem:[%s2320 + $0x78] sm:$0xff] %v2331
                  %v2333 = vld [vmem:[%s2319 + $0x60] sm:$0xff]
                  %2334 = vst [vmem:[%s2320 + $0xa8] sm:$0xff] %v2333
                  %v2335 = vld [vmem:[%s2319 + $0x68] sm:$0xff]
                  %2336 = vst [vmem:[%s2320 + $0xb0] sm:$0xff] %v2335
                  %v2337 = vld [vmem:[%s2319 + $0x80] sm:$0xff]
                  %2338 = vst [vmem:[%s2320 + $0xe0] sm:$0xff] %v2337
                  %v2339 = vld [vmem:[%s2319 + $0x88] sm:$0xff]
                  %2340 = vst [vmem:[%s2320 + $0xe8] sm:$0xff] %v2339
                  %v2341 = vld [vmem:[%s2319 + $0xa0] sm:$0xff]
                  %2342 = vst [vmem:[%s2320 + $0x118] sm:$0xff] %v2341
                  %v2343 = vld [vmem:[%s2319 + $0xa8] sm:$0xff]
                  %2344 = vst [vmem:[%s2320 + $0x120] sm:$0xff] %v2343
                  %v2345 = vld [vmem:[%s2319 + $0xc0] sm:$0xff]
                  %2346 = vst [vmem:[%s2320 + $0x150] sm:$0xff] %v2345
                  %v2347 = vld [vmem:[%s2319 + $0xc8] sm:$0xff]
                  %2348 = vst [vmem:[%s2320 + $0x158] sm:$0xff] %v2347
                  %v2349 = vld [vmem:[%s2319 + $0xe0] sm:$0xff]
                  %2350 = vst [vmem:[%s2320 + $0x188] sm:$0xff] %v2349
                  %v2351 = vld [vmem:[%s2319 + $0xe8] sm:$0xff]
                  %2352 = vst [vmem:[%s2320 + $0x190] sm:$0xff] %v2351
                  %v2353 = vld [vmem:[%s2319 + $0x100] sm:$0xff]
                  %2354 = vst [vmem:[%s2320 + $0x1c0] sm:$0xff] %v2353
                  %v2355 = vld [vmem:[%s2319 + $0x108] sm:$0xff]
                  %2356 = vst [vmem:[%s2320 + $0x1c8] sm:$0xff] %v2355
                  %v2357 = vld [vmem:[%s2319 + $0x120] sm:$0xff]
                  %2358 = vst [vmem:[%s2320 + $0x1f8] sm:$0xff] %v2357
                  %v2359 = vld [vmem:[%s2319 + $0x128] sm:$0xff]
                  %2360 = vst [vmem:[%s2320 + $0x200] sm:$0xff] %v2359
                  %v2361 = vld [vmem:[%s2319 + $0x140] sm:$0xff]
                  %2362 = vst [vmem:[%s2320 + $0x230] sm:$0xff] %v2361
                  %v2363 = vld [vmem:[%s2319 + $0x148] sm:$0xff]
                  %2364 = vst [vmem:[%s2320 + $0x238] sm:$0xff] %v2363
                  %v2365 = vld [vmem:[%s2319 + $0x160] sm:$0xff]
                  %2366 = vst [vmem:[%s2320 + $0x268] sm:$0xff] %v2365
                  %v2367 = vld [vmem:[%s2319 + $0x168] sm:$0xff]
                  %2368 = vst [vmem:[%s2320 + $0x270] sm:$0xff] %v2367
                  %v2369 = vld [vmem:[%s2319 + $0x180] sm:$0xff]
                  %2370 = vst [vmem:[%s2320 + $0x2a0] sm:$0xff] %v2369
                  %v2371 = vld [vmem:[%s2319 + $0x188] sm:$0xff]
                  %2372 = vst [vmem:[%s2320 + $0x2a8] sm:$0xff] %v2371
                  %v2373 = vld [vmem:[%s2319 + $0x1a0] sm:$0xff]
                  %2374 = vst [vmem:[%s2320 + $0x2d8] sm:$0xff] %v2373
                  %v2375 = vld [vmem:[%s2319 + $0x1a8] sm:$0xff]
                  %2376 = vst [vmem:[%s2320 + $0x2e0] sm:$0xff] %v2375
                  %v2377 = vld [vmem:[%s2319 + $0x1c0] sm:$0xff]
                  %2378 = vst [vmem:[%s2320 + $0x310] sm:$0xff] %v2377
                  %v2379 = vld [vmem:[%s2319 + $0x1c8] sm:$0xff]
                  %2380 = vst [vmem:[%s2320 + $0x318] sm:$0xff] %v2379
                  %v2381 = vld [vmem:[%s2319 + $0x1e0] sm:$0xff]
                  %2382 = vst [vmem:[%s2320 + $0x348] sm:$0xff] %v2381
                  %v2383 = vld [vmem:[%s2319 + $0x1e8] sm:$0xff]
                  %2384 = vst [vmem:[%s2320 + $0x350] sm:$0xff] %v2383
                  %s2385 = sadd.s32 1, %s2318
                  %p2386 = scmp.ge.s32.totalorder %s2385, %s2311
                  %s2387 = scalar_select %p2386, 0, %s2385
                  %s2388 = smul.u32 %s2387, 16
                  %s2389 = smul.u32 %s2387, 16
                  %s2390 = scalar_lea.vmem %s2093, %s2388 [#allocation4]
                  %s2391 = scalar_lea.vmem %s2106, %s2389
                $region222: #{fused_forward.1} parent=216 // loop_footer
                  %s2315 = sadd.s32 %s2313, 1
                $region223: #{fused_forward.1} parent=216 // loop_footer_branch
                  %2312 = sbr.rel target = $region219
                $region224: #{fused_forward.1} parent=216 // loop_exit
                  _
                %s2392 = sshrl.u32 %s2310, 1
                %s2393 = sand.u32 %s2310, 1
                %s2394 = smul.u32 %s2392, 2
                %s2395 = smul.u32 8, %s2394
                %s2396 = scalar_lea.vmem %s2093, %s2395 [#allocation4]
                %s2397 = smul.u32 8, %s2394
                %s2398 = scalar_lea.vmem %s2106, %s2397
                // While loop
                $region225: #{fused_forward.1} parent=216 // loop_pre_header
                  _
                $region226: #{fused_forward.1} parent=216 // loop_header
                  %s2400 = sphi 0, %s2402
                  %p2401 = scmp.ge.s32.totalorder %s2400, %s2393
                  %s2405 = sphi 0, %s2442
                  %s2406 = sphi %s2396, %s2445
                  %s2407 = sphi %s2398, %s2446
                $region227: #{fused_forward.1} parent=216 // loop_header_branch
                  %2404 = sbr.rel (%p2401) target = $region231
                $region228: #{fused_forward.1} parent=216 // loop_body
                  %v2408 = vld [vmem:[%s2406] sm:$0xff]
                  %2409 = vst [vmem:[%s2407] sm:$0xff] %v2408
                  %v2410 = vld [vmem:[%s2406 + $0x20] sm:$0xff]
                  %2411 = vst [vmem:[%s2407 + $0x38] sm:$0xff] %v2410
                  %v2412 = vld [vmem:[%s2406 + $0x40] sm:$0xff]
                  %2413 = vst [vmem:[%s2407 + $0x70] sm:$0xff] %v2412
                  %v2414 = vld [vmem:[%s2406 + $0x60] sm:$0xff]
                  %2415 = vst [vmem:[%s2407 + $0xa8] sm:$0xff] %v2414
                  %v2416 = vld [vmem:[%s2406 + $0x80] sm:$0xff]
                  %2417 = vst [vmem:[%s2407 + $0xe0] sm:$0xff] %v2416
                  %v2418 = vld [vmem:[%s2406 + $0xa0] sm:$0xff]
                  %2419 = vst [vmem:[%s2407 + $0x118] sm:$0xff] %v2418
                  %v2420 = vld [vmem:[%s2406 + $0xc0] sm:$0xff]
                  %2421 = vst [vmem:[%s2407 + $0x150] sm:$0xff] %v2420
                  %v2422 = vld [vmem:[%s2406 + $0xe0] sm:$0xff]
                  %2423 = vst [vmem:[%s2407 + $0x188] sm:$0xff] %v2422
                  %v2424 = vld [vmem:[%s2406 + $0x100] sm:$0xff]
                  %2425 = vst [vmem:[%s2407 + $0x1c0] sm:$0xff] %v2424
                  %v2426 = vld [vmem:[%s2406 + $0x120] sm:$0xff]
                  %2427 = vst [vmem:[%s2407 + $0x1f8] sm:$0xff] %v2426
                  %v2428 = vld [vmem:[%s2406 + $0x140] sm:$0xff]
                  %2429 = vst [vmem:[%s2407 + $0x230] sm:$0xff] %v2428
                  %v2430 = vld [vmem:[%s2406 + $0x160] sm:$0xff]
                  %2431 = vst [vmem:[%s2407 + $0x268] sm:$0xff] %v2430
                  %v2432 = vld [vmem:[%s2406 + $0x180] sm:$0xff]
                  %2433 = vst [vmem:[%s2407 + $0x2a0] sm:$0xff] %v2432
                  %v2434 = vld [vmem:[%s2406 + $0x1a0] sm:$0xff]
                  %2435 = vst [vmem:[%s2407 + $0x2d8] sm:$0xff] %v2434
                  %v2436 = vld [vmem:[%s2406 + $0x1c0] sm:$0xff]
                  %2437 = vst [vmem:[%s2407 + $0x310] sm:$0xff] %v2436
                  %v2438 = vld [vmem:[%s2406 + $0x1e0] sm:$0xff]
                  %2439 = vst [vmem:[%s2407 + $0x348] sm:$0xff] %v2438
                  %s2440 = sadd.s32 1, %s2405
                  %p2441 = scmp.ge.s32.totalorder %s2440, %s2393
                  %s2442 = scalar_select %p2441, 0, %s2440
                  %s2443 = smul.u32 %s2442, 8
                  %s2444 = smul.u32 %s2442, 8
                  %s2445 = scalar_lea.vmem %s2396, %s2443 [#allocation4]
                  %s2446 = scalar_lea.vmem %s2398, %s2444
                $region229: #{fused_forward.1} parent=216 // loop_footer
                  %s2402 = sadd.s32 %s2400, 1
                $region230: #{fused_forward.1} parent=216 // loop_footer_branch
                  %2399 = sbr.rel target = $region226
                $region231: #{fused_forward.1} parent=216 // loop_exit
                  _
                %s2447 = sshll.u32 1, %s2305
                %s2448 = ssub.s32 %s2447, 1
                loop: start=0, step=1, limit=1
                $region232: #{fused_forward.1} parent=216 // loop_pre_header
                  _
                $region233: #{fused_forward.1} parent=216 // loop_header
                  %s2450 = sphi 0, %s2454
                  %p2451 = scmp.ge.s32.totalorder %s2450, 1
                  %s2455 = sphi %s2307, %s2307
                  %s2456 = sphi %s2309, %s2309
                $region234: #{fused_forward.1} parent=216 // loop_header_branch
                  %2453 = sbr.rel (%p2451) target = $region238
                $region235: #{fused_forward.1} parent=216 // loop_body
                  %v2457 = vld [vmem:[%s2455] sm:%s2448]
                  %2458 = vst [vmem:[%s2456] sm:%s2448] %v2457
                  %v2459 = vld [vmem:[%s2455 + $0x20] sm:%s2448]
                  %2460 = vst [vmem:[%s2456 + $0x38] sm:%s2448] %v2459
                  %v2461 = vld [vmem:[%s2455 + $0x40] sm:%s2448]
                  %2462 = vst [vmem:[%s2456 + $0x70] sm:%s2448] %v2461
                  %v2463 = vld [vmem:[%s2455 + $0x60] sm:%s2448]
                  %2464 = vst [vmem:[%s2456 + $0xa8] sm:%s2448] %v2463
                  %v2465 = vld [vmem:[%s2455 + $0x80] sm:%s2448]
                  %2466 = vst [vmem:[%s2456 + $0xe0] sm:%s2448] %v2465
                  %v2467 = vld [vmem:[%s2455 + $0xa0] sm:%s2448]
                  %2468 = vst [vmem:[%s2456 + $0x118] sm:%s2448] %v2467
                  %v2469 = vld [vmem:[%s2455 + $0xc0] sm:%s2448]
                  %2470 = vst [vmem:[%s2456 + $0x150] sm:%s2448] %v2469
                  %v2471 = vld [vmem:[%s2455 + $0xe0] sm:%s2448]
                  %2472 = vst [vmem:[%s2456 + $0x188] sm:%s2448] %v2471
                  %v2473 = vld [vmem:[%s2455 + $0x100] sm:%s2448]
                  %2474 = vst [vmem:[%s2456 + $0x1c0] sm:%s2448] %v2473
                  %v2475 = vld [vmem:[%s2455 + $0x120] sm:%s2448]
                  %2476 = vst [vmem:[%s2456 + $0x1f8] sm:%s2448] %v2475
                  %v2477 = vld [vmem:[%s2455 + $0x140] sm:%s2448]
                  %2478 = vst [vmem:[%s2456 + $0x230] sm:%s2448] %v2477
                  %v2479 = vld [vmem:[%s2455 + $0x160] sm:%s2448]
                  %2480 = vst [vmem:[%s2456 + $0x268] sm:%s2448] %v2479
                  %v2481 = vld [vmem:[%s2455 + $0x180] sm:%s2448]
                  %2482 = vst [vmem:[%s2456 + $0x2a0] sm:%s2448] %v2481
                  %v2483 = vld [vmem:[%s2455 + $0x1a0] sm:%s2448]
                  %2484 = vst [vmem:[%s2456 + $0x2d8] sm:%s2448] %v2483
                  %v2485 = vld [vmem:[%s2455 + $0x1c0] sm:%s2448]
                  %2486 = vst [vmem:[%s2456 + $0x310] sm:%s2448] %v2485
                  %v2487 = vld [vmem:[%s2455 + $0x1e0] sm:%s2448]
                  %2488 = vst [vmem:[%s2456 + $0x348] sm:%s2448] %v2487
                $region236: #{fused_forward.1} parent=216 // loop_footer
                  %s2454 = sadd.s32 1, %s2450
                $region237: #{fused_forward.1} parent=216 // loop_footer_branch
                  %2449 = sbr.rel target = $region233
                $region238: #{fused_forward.1} parent=216 // loop_exit
                  _
              $region217: #{fused_forward.1} parent=183 // pred_fallthru
                _
            $region184: #{fused_forward.1} parent=179 // pred_fallthru
              _
            // Predicated region
            $region185: #{fused_forward.1} parent=179 // pred_check
              %p2115 = pneg %p2111
            $region186: #{fused_forward.1} parent=179 // pred_check_branch
              %2117 = sbr.rel (%p2115) target = $region188
            $region187: #{fused_forward.1} parent=179 // pred_region
              %s2118 = sshll.u32 1, %s2107
              %s2119 = ssub.s32 %s2118, 1
              loop: start=0, step=1, limit=1
              $region189: #{fused_forward.1} parent=187 // loop_pre_header
                _
              $region190: #{fused_forward.1} parent=187 // loop_header
                %s2121 = sphi 0, %s2125
                %p2122 = scmp.ge.s32.totalorder %s2121, 1
                %s2126 = sphi %s2093, %s2093
                %s2127 = sphi %s2106, %s2106
              $region191: #{fused_forward.1} parent=187 // loop_header_branch
                %2124 = sbr.rel (%p2122) target = $region195
              $region192: #{fused_forward.1} parent=187 // loop_body
                %v2128 = vld [vmem:[%s2126] sm:%s2119]
                %2129 = vst [vmem:[%s2127] sm:%s2119] %v2128
                %v2130 = vld [vmem:[%s2126 + $0x20] sm:%s2119]
                %2131 = vst [vmem:[%s2127 + $0x38] sm:%s2119] %v2130
                %v2132 = vld [vmem:[%s2126 + $0x40] sm:%s2119]
                %2133 = vst [vmem:[%s2127 + $0x70] sm:%s2119] %v2132
                %v2134 = vld [vmem:[%s2126 + $0x60] sm:%s2119]
                %2135 = vst [vmem:[%s2127 + $0xa8] sm:%s2119] %v2134
                %v2136 = vld [vmem:[%s2126 + $0x80] sm:%s2119]
                %2137 = vst [vmem:[%s2127 + $0xe0] sm:%s2119] %v2136
                %v2138 = vld [vmem:[%s2126 + $0xa0] sm:%s2119]
                %2139 = vst [vmem:[%s2127 + $0x118] sm:%s2119] %v2138
                %v2140 = vld [vmem:[%s2126 + $0xc0] sm:%s2119]
                %2141 = vst [vmem:[%s2127 + $0x150] sm:%s2119] %v2140
                %v2142 = vld [vmem:[%s2126 + $0xe0] sm:%s2119]
                %2143 = vst [vmem:[%s2127 + $0x188] sm:%s2119] %v2142
                %v2144 = vld [vmem:[%s2126 + $0x100] sm:%s2119]
                %2145 = vst [vmem:[%s2127 + $0x1c0] sm:%s2119] %v2144
                %v2146 = vld [vmem:[%s2126 + $0x120] sm:%s2119]
                %2147 = vst [vmem:[%s2127 + $0x1f8] sm:%s2119] %v2146
                %v2148 = vld [vmem:[%s2126 + $0x140] sm:%s2119]
                %2149 = vst [vmem:[%s2127 + $0x230] sm:%s2119] %v2148
                %v2150 = vld [vmem:[%s2126 + $0x160] sm:%s2119]
                %2151 = vst [vmem:[%s2127 + $0x268] sm:%s2119] %v2150
                %v2152 = vld [vmem:[%s2126 + $0x180] sm:%s2119]
                %2153 = vst [vmem:[%s2127 + $0x2a0] sm:%s2119] %v2152
                %v2154 = vld [vmem:[%s2126 + $0x1a0] sm:%s2119]
                %2155 = vst [vmem:[%s2127 + $0x2d8] sm:%s2119] %v2154
                %v2156 = vld [vmem:[%s2126 + $0x1c0] sm:%s2119]
                %2157 = vst [vmem:[%s2127 + $0x310] sm:%s2119] %v2156
                %v2158 = vld [vmem:[%s2126 + $0x1e0] sm:%s2119]
                %2159 = vst [vmem:[%s2127 + $0x348] sm:%s2119] %v2158
              $region193: #{fused_forward.1} parent=187 // loop_footer
                %s2125 = sadd.s32 1, %s2121
              $region194: #{fused_forward.1} parent=187 // loop_footer_branch
                %2120 = sbr.rel target = $region190
              $region195: #{fused_forward.1} parent=187 // loop_exit
                _
            $region188: #{fused_forward.1} parent=179 // pred_fallthru
              _
          $region180: #{fused_forward.1} parent=175 // pred_fallthru
            _
          %2489 = vnop
        $region176: #{fused_forward.1} parent=163 // pred_fallthru
          _
      $region164: #{fused_forward.1} parent=5 // pred_fallthru
        _
      %p2490 = scmp.le.s32.totalorder 2, %s11
      // Predicated region
      $region239: #{fused_forward.1} parent=5 // pred_check
        %p2491 = pneg %p2490
      $region240: #{fused_forward.1} parent=5 // pred_check_branch
        %2493 = sbr.rel (%p2491) target = $region242
      $region241: #{fused_forward.1} parent=5 // pred_region
        %s2494 = ssub.s32 %s11, 2
        // Predicated region
        $region243: #{fused_forward.1} parent=241 // pred_check
          %p2495 = pneg %p173
        $region244: #{fused_forward.1} parent=241 // pred_check_branch
          %2497 = sbr.rel (%p2495) target = $region246
        $region245: #{fused_forward.1} parent=241 // pred_region
          %s2498 = sand.u32 %s158, 1
          %s2499 = sand.u32 %s158, 1
          %s2500 = smul.addr %s2499, 512
          %s2501 = scalar_lea.vmem [#allocation4], %s2500
        $region246: #{fused_forward.1} parent=241 // pred_fallthru
          _
      $region242: #{fused_forward.1} parent=5 // pred_fallthru
        _
    $region6: #{fused_forward.1} parent=1 // loop_footer
      %s15 = sadd.s32 1, %s11
    $region7: #{fused_forward.1} parent=1 // loop_footer_branch
      %10 = sbr.rel target = $region3
    $region8: #{fused_forward.1} parent=1 // loop_exit
      _

</llo_original>
